<compile_context>
chip_gen: v7x
topology: tpu7x:2x2x1
jax: 0.10.0
libtpu: 0.0.40
codegen_flags: <defaults>
</compile_context>

<pallas_src>
import math
import numpy as np
import jax
import jax.numpy as jnp
from jax.experimental import pallas as pl
from jax.experimental.pallas import tpu as pltpu

# --- problem sizes (consistent with the module's constructor args) ---
BATCH = 2
MAX_LEN = 8           # sequence length == max_len
EMBED_DIM = 32
FF_DIM = 64
NUM_HEADS = 4
HEAD_DIM = EMBED_DIM // NUM_HEADS
LN_EPS = 1e-6

# lane offsets of each weight inside the packed (E, 768) bf16 slab (128-aligned)
OFF_QKV, OFF_WO, OFF_W1, OFF_W2, OFF_WL1, OFF_WL2 = 0, 128, 256, 384, 512, 640
# rows of each vector inside the packed (32, 128) f32 bias / LN / pos slab
(ROW_BQKV, ROW_BO, ROW_LN1G, ROW_LN1B, ROW_B1,
 ROW_B2, ROW_LN2G, ROW_LN2B, ROW_BL1, ROW_BL2) = range(10)
ROW_POS = 16          # rows 16..31 hold the (B*S, E) positional encoding


def _layernorm(y, gamma, beta):
    # PyTorch LayerNorm: biased variance over last dim, eps inside sqrt. f32.
    mu = jnp.mean(y, axis=-1, keepdims=True)
    var = jnp.mean((y - mu) ** 2, axis=-1, keepdims=True)
    return (y - mu) * jax.lax.rsqrt(var + LN_EPS) * gamma + beta


def neurallog_kernel(x_ref, w_ref, b_ref, out_ref):
    E, FF, S, B, H, HD = EMBED_DIM, FF_DIM, MAX_LEN, BATCH, NUM_HEADS, HEAD_DIM
    scale = 1.0 / math.sqrt(HD)

    w = w_ref[...]          # (E, 768) bf16 packed weight slab
    bias = b_ref[...]       # (32, 128) f32 packed bias / LN / pos slab

    # static, 128-aligned lane slices of the weight slab
    wqkvT = w[:, OFF_QKV:OFF_QKV + 3 * E]     # (E, 3E)
    woT   = w[:, OFF_WO:OFF_WO + E]           # (E, E)
    w1T   = w[:, OFF_W1:OFF_W1 + FF]          # (E, FF)
    w2    = w[:, OFF_W2:OFF_W2 + FF]          # (E, FF)  Linear(FF->E) weight, untransposed
    wl1T  = w[:, OFF_WL1:OFF_WL1 + 32]        # (E, 32)
    wl2Tp = w[:, OFF_WL2:OFF_WL2 + 128]       # (32, 128) zero-padded beyond col 2

    bqkv = bias[ROW_BQKV:ROW_BQKV + 1, 0:3 * E]
    bo   = bias[ROW_BO:ROW_BO + 1, 0:E]
    ln1g = bias[ROW_LN1G:ROW_LN1G + 1, 0:E]
    ln1b = bias[ROW_LN1B:ROW_LN1B + 1, 0:E]
    b1   = bias[ROW_B1:ROW_B1 + 1, 0:FF]
    b2   = bias[ROW_B2:ROW_B2 + 1, 0:E]
    ln2g = bias[ROW_LN2G:ROW_LN2G + 1, 0:E]
    ln2b = bias[ROW_LN2B:ROW_LN2B + 1, 0:E]
    bl1  = bias[ROW_BL1:ROW_BL1 + 1, 0:32]
    bl2p = bias[ROW_BL2:ROW_BL2 + 1, :]       # (1, 128) zero-padded
    pos  = bias[ROW_POS:ROW_POS + B * S, 0:E]  # (B*S, E) positional encoding

    # --- PositionEmbedding, batch folded into rows: (B*S, E) f32 ---
    x = x_ref[...] + pos

    # --- fused QKV projection for both batches at once (1 MXU matmul) ---
    qkv = jnp.dot(x.astype(jnp.bfloat16), wqkvT,
                  preferred_element_type=jnp.float32) + bqkv       # (B*S, 3E) f32

    # --- head split to (B*H, S, HD) for batched attention ---
    def split_heads(off):
        return jnp.stack(
            [qkv[b * S:(b + 1) * S, off + h * HD:off + (h + 1) * HD]
             for b in range(B) for h in range(H)], axis=0).astype(jnp.bfloat16)

    qh = split_heads(0)         # (B*H, S, HD)
    kh = split_heads(E)
    vh = split_heads(2 * E)

    # batched scores + softmax (softmax math kept in f32)
    s = jnp.einsum('bqd,bkd->bqk', qh, kh,
                   preferred_element_type=jnp.float32) * scale     # (B*H, S, S)
    s = s - jnp.max(s, axis=-1, keepdims=True)
    p = jnp.exp(s)
    p = p * pl.reciprocal(jnp.sum(p, axis=-1, keepdims=True), approx=True)
    ctx = jnp.einsum('bqk,bkd->bqd', p.astype(jnp.bfloat16), vh,
                     preferred_element_type=jnp.float32)           # (B*H, S, HD)

    # --- merge heads -> (B*S, E); single output projection for both batches ---
    ctx_all = jnp.concatenate(
        [jnp.concatenate([ctx[b * H + h] for h in range(H)], axis=-1)
         for b in range(B)], axis=0)                               # (B*S, E)
    attn = jnp.dot(ctx_all.astype(jnp.bfloat16), woT,
                   preferred_element_type=jnp.float32) + bo

    # --- residual + LayerNorm1 (f32) ---
    out1 = _layernorm(x + attn, ln1g, ln1b)

    # --- feed-forward: Linear(E->FF) -> ReLU -> Linear(FF->E) ---
    ff = jnp.dot(out1.astype(jnp.bfloat16), w1T,
                 preferred_element_type=jnp.float32) + b1
    ff = jnp.maximum(ff, 0.0)
    # w2 passed untransposed -> contract rhs dim 1 (ff @ w2^T on the MXU)
    ff = jax.lax.dot_general(ff.astype(jnp.bfloat16), w2,
                             (((1,), (1,)), ((), ())),
                             preferred_element_type=jnp.float32) + b2

    # --- residual + LayerNorm2 (f32) ---
    out2 = _layernorm(out1 + ff, ln2g, ln2b)                       # (B*S, E)

    # --- mean over sequence per batch ---
    pooled = jnp.concatenate(
        [jnp.mean(out2[b * S:(b + 1) * S, :], axis=0, keepdims=True)
         for b in range(B)], axis=0)                               # (B, E)

    # --- classifier head, both batches at once; lane-dense (B, 128) store ---
    h1 = jnp.maximum(
        jnp.dot(pooled.astype(jnp.bfloat16), wl1T,
                preferred_element_type=jnp.float32) + bl1, 0.0)
    logits = jnp.dot(h1.astype(jnp.bfloat16), wl2Tp,
                     preferred_element_type=jnp.float32) + bl2p    # (B, 128)
    out_ref[...] = logits


def positional_encoding(position, d_model):
    pos = np.arange(position)[:, None].astype(np.float32)
    i = np.arange(d_model)[None, :]
    angle_rates = 1.0 / np.power(10000.0, 2 * (i // 2) / np.float32(d_model))
    angle_rads = pos * angle_rates
    angle_rads[:, 0::2] = np.sin(angle_rads[:, 0::2])
    angle_rads[:, 1::2] = np.cos(angle_rads[:, 1::2])
    return jnp.asarray(angle_rads, dtype=jnp.float32)              # (max_len, E)


def init_params(key):
    E, FF = EMBED_DIM, FF_DIM
    ks = jax.random.split(key, 14)

    def w(k, shape, scale=0.05):
        return jax.random.normal(k, shape, jnp.float32) * scale

    return dict(
        wq=w(ks[0], (E, E)), wk=w(ks[1], (E, E)), wv=w(ks[2], (E, E)),
        bq=w(ks[3], (E,)),   bk=w(ks[4], (E,)),   bv=w(ks[5], (E,)),
        wo=w(ks[6], (E, E)), bo=w(ks[7], (E,)),
        ln1g=jnp.ones((E,), jnp.float32), ln1b=jnp.zeros((E,), jnp.float32),
        w1=w(ks[8], (FF, E)), b1=w(ks[9], (FF,)),
        w2=w(ks[10], (E, FF)), b2=w(ks[11], (E,)),
        ln2g=jnp.ones((E,), jnp.float32), ln2b=jnp.zeros((E,), jnp.float32),
        wl1=w(ks[12], (32, E)), bl1=jnp.zeros((32,), jnp.float32),
        wl2=w(ks[13], (2, 32)), bl2=jnp.zeros((2,), jnp.float32),
    )


def pack_params(params, pos_tiled):
    """Pack weights into one bf16 slab; biases/LN vectors + pos table into one f32 slab."""
    def pad128(a):
        return jnp.pad(a, ((0, 0), (0, 128 - a.shape[1])))

    wqkvT = jnp.concatenate(
        [params["wq"].T, params["wk"].T, params["wv"].T], axis=1)   # (E, 3E)
    wslab = jnp.concatenate([
        pad128(wqkvT),            # lanes   0:128 (data   0: 96)
        pad128(params["wo"].T),   # lanes 128:256 (data 128:160)
        pad128(params["w1"].T),   # lanes 256:384 (data 256:320)
        pad128(params["w2"]),     # lanes 384:512 (data 384:448)  untransposed
        pad128(params["wl1"].T),  # lanes 512:640 (data 512:544)
        pad128(params["wl2"].T),  # lanes 640:768 (data 640:642)
    ], axis=1).astype(jnp.bfloat16)                                 # (32, 768)

    def row(v):
        v = v.reshape(1, -1)
        return jnp.pad(v, ((0, 0), (0, 128 - v.shape[1])))

    bias_rows = jnp.concatenate([
        row(jnp.concatenate([params["bq"], params["bk"], params["bv"]])),
        row(params["bo"]), row(params["ln1g"]), row(params["ln1b"]),
        row(params["b1"]), row(params["b2"]),
        row(params["ln2g"]), row(params["ln2b"]),
        row(params["bl1"]), row(params["bl2"]),
    ], axis=0)                                                      # (10, 128)
    bias_rows = jnp.pad(bias_rows, ((0, ROW_POS - bias_rows.shape[0]), (0, 0)))  # (16,128)
    pos_rows = jnp.pad(pos_tiled, ((0, 0), (0, 128 - pos_tiled.shape[1])))       # (16,128)
    bslab = jnp.concatenate([bias_rows, pos_rows], axis=0).astype(jnp.float32)   # (32,128)
    return wslab, bslab


def neurallog_forward(x, wslab, bslab):
    B, S, E = x.shape
    x2d = x.reshape(B * S, E)       # fold batch into rows for the kernel
    in_specs = [pl.BlockSpec(memory_space=pltpu.MemorySpace.VMEM) for _ in range(3)]
    out_spec = pl.BlockSpec(memory_space=pltpu.MemorySpace.VMEM)
    logits_padded = pl.pallas_call(
        neurallog_kernel,
        out_shape=jax.ShapeDtypeStruct((B, 128), jnp.float32),
        in_specs=in_specs,
        out_specs=out_spec,
    )(x2d, wslab, bslab)
    return logits_padded[:, :2]


if __name__ == "__main__":
    key = jax.random.PRNGKey(0)
    k_x, k_p = jax.random.split(key)

    x = jax.random.normal(k_x, (BATCH, MAX_LEN, EMBED_DIM), jnp.float32)
    params = init_params(k_p)
    pos = positional_encoding(MAX_LEN, EMBED_DIM)
    pos_tiled = jnp.tile(pos, (BATCH, 1))          # constant prep: (B*S, E)
    wslab, bslab = pack_params(params, pos_tiled)

    fwd = jax.jit(neurallog_forward)
    out = jax.block_until_ready(fwd(x, wslab, bslab))

    assert out.shape == (BATCH, 2) and out.dtype == jnp.float32
    assert bool(jnp.all(jnp.isfinite(out)))
    print("KERNEL_OK")
</pallas_src>

<mosaic_0001>
module attributes {stable_mosaic.version = 11 : i64} {
  func.func @neurallog_kernel(%arg0: memref<16x32xf32, #tpu.memory_space<vmem>>, %arg1: memref<32x768xbf16, #tpu.memory_space<vmem>>, %arg2: memref<32x128xf32, #tpu.memory_space<vmem>>, %arg3: memref<2x128xf32, #tpu.memory_space<vmem>>) attributes {dimension_semantics = [], scalar_prefetch = 0 : i64, scratch_operands = 0 : i64, tpu.core_type = #tpu.core_type<tc>} {
    %c0 = arith.constant 0 : index
    %c0_0 = arith.constant 0 : index
    %0 = vector.load %arg1[%c0, %c0_0] : memref<32x768xbf16, #tpu.memory_space<vmem>>, vector<32x768xbf16>
    %c0_1 = arith.constant 0 : index
    %c0_2 = arith.constant 0 : index
    %1 = vector.load %arg2[%c0_1, %c0_2] : memref<32x128xf32, #tpu.memory_space<vmem>>, vector<32x128xf32>
    %2 = vector.extract_strided_slice %0 {offsets = [0, 0], sizes = [32, 96], strides = [1, 1]} : vector<32x768xbf16> to vector<32x96xbf16>
    %3 = vector.extract_strided_slice %0 {offsets = [0, 128], sizes = [32, 32], strides = [1, 1]} : vector<32x768xbf16> to vector<32x32xbf16>
    %4 = vector.extract_strided_slice %0 {offsets = [0, 256], sizes = [32, 64], strides = [1, 1]} : vector<32x768xbf16> to vector<32x64xbf16>
    %5 = vector.extract_strided_slice %0 {offsets = [0, 384], sizes = [32, 64], strides = [1, 1]} : vector<32x768xbf16> to vector<32x64xbf16>
    %6 = vector.extract_strided_slice %0 {offsets = [0, 512], sizes = [32, 32], strides = [1, 1]} : vector<32x768xbf16> to vector<32x32xbf16>
    %7 = vector.extract_strided_slice %0 {offsets = [0, 640], sizes = [32, 128], strides = [1, 1]} : vector<32x768xbf16> to vector<32x128xbf16>
    %8 = vector.extract_strided_slice %1 {offsets = [0, 0], sizes = [1, 96], strides = [1, 1]} : vector<32x128xf32> to vector<1x96xf32>
    %9 = vector.extract_strided_slice %1 {offsets = [1, 0], sizes = [1, 32], strides = [1, 1]} : vector<32x128xf32> to vector<1x32xf32>
    %10 = vector.extract_strided_slice %1 {offsets = [2, 0], sizes = [1, 32], strides = [1, 1]} : vector<32x128xf32> to vector<1x32xf32>
    %11 = vector.extract_strided_slice %1 {offsets = [3, 0], sizes = [1, 32], strides = [1, 1]} : vector<32x128xf32> to vector<1x32xf32>
    %12 = vector.extract_strided_slice %1 {offsets = [4, 0], sizes = [1, 64], strides = [1, 1]} : vector<32x128xf32> to vector<1x64xf32>
    %13 = vector.extract_strided_slice %1 {offsets = [5, 0], sizes = [1, 32], strides = [1, 1]} : vector<32x128xf32> to vector<1x32xf32>
    %14 = vector.extract_strided_slice %1 {offsets = [6, 0], sizes = [1, 32], strides = [1, 1]} : vector<32x128xf32> to vector<1x32xf32>
    %15 = vector.extract_strided_slice %1 {offsets = [7, 0], sizes = [1, 32], strides = [1, 1]} : vector<32x128xf32> to vector<1x32xf32>
    %16 = vector.extract_strided_slice %1 {offsets = [8, 0], sizes = [1, 32], strides = [1, 1]} : vector<32x128xf32> to vector<1x32xf32>
    %17 = vector.extract_strided_slice %1 {offsets = [9, 0], sizes = [1, 128], strides = [1, 1]} : vector<32x128xf32> to vector<1x128xf32>
    %18 = vector.extract_strided_slice %1 {offsets = [16, 0], sizes = [16, 32], strides = [1, 1]} : vector<32x128xf32> to vector<16x32xf32>
    %c0_3 = arith.constant 0 : index
    %c0_4 = arith.constant 0 : index
    %19 = vector.load %arg0[%c0_3, %c0_4] : memref<16x32xf32, #tpu.memory_space<vmem>>, vector<16x32xf32>
    %20 = arith.addf %19, %18 : vector<16x32xf32>
    %21 = arith.truncf %20 : vector<16x32xf32> to vector<16x32xbf16>
    %cst = arith.constant dense<0.000000e+00> : vector<16x96xf32>
    %22 = tpu.matmul %21, %2, %cst {dimension_numbers = #tpu.dot_dimension_numbers<[1], [0], [0], [1], [0, 0, 1, 1], [], []>} : vector<16x32xbf16>, vector<32x96xbf16>, vector<16x96xf32> -> vector<16x96xf32>
    %23 = vector.broadcast %8 : vector<1x96xf32> to vector<16x96xf32>
    %24 = arith.addf %22, %23 : vector<16x96xf32>
    %25 = vector.extract_strided_slice %24 {offsets = [0, 0], sizes = [8, 8], strides = [1, 1]} : vector<16x96xf32> to vector<8x8xf32>
    %26 = vector.extract_strided_slice %24 {offsets = [0, 8], sizes = [8, 8], strides = [1, 1]} : vector<16x96xf32> to vector<8x8xf32>
    %27 = vector.extract_strided_slice %24 {offsets = [0, 16], sizes = [8, 8], strides = [1, 1]} : vector<16x96xf32> to vector<8x8xf32>
    %28 = vector.extract_strided_slice %24 {offsets = [0, 24], sizes = [8, 8], strides = [1, 1]} : vector<16x96xf32> to vector<8x8xf32>
    %29 = vector.extract_strided_slice %24 {offsets = [8, 0], sizes = [8, 8], strides = [1, 1]} : vector<16x96xf32> to vector<8x8xf32>
    %30 = vector.extract_strided_slice %24 {offsets = [8, 8], sizes = [8, 8], strides = [1, 1]} : vector<16x96xf32> to vector<8x8xf32>
    %31 = vector.extract_strided_slice %24 {offsets = [8, 16], sizes = [8, 8], strides = [1, 1]} : vector<16x96xf32> to vector<8x8xf32>
    %32 = vector.extract_strided_slice %24 {offsets = [8, 24], sizes = [8, 8], strides = [1, 1]} : vector<16x96xf32> to vector<8x8xf32>
    %33 = vector.shape_cast %25 : vector<8x8xf32> to vector<1x8x8xf32>
    %34 = vector.shape_cast %26 : vector<8x8xf32> to vector<1x8x8xf32>
    %35 = vector.shape_cast %27 : vector<8x8xf32> to vector<1x8x8xf32>
    %36 = vector.shape_cast %28 : vector<8x8xf32> to vector<1x8x8xf32>
    %37 = vector.shape_cast %29 : vector<8x8xf32> to vector<1x8x8xf32>
    %38 = vector.shape_cast %30 : vector<8x8xf32> to vector<1x8x8xf32>
    %39 = vector.shape_cast %31 : vector<8x8xf32> to vector<1x8x8xf32>
    %40 = vector.shape_cast %32 : vector<8x8xf32> to vector<1x8x8xf32>
    %41 = tpu.concatenate %33, %34, %35, %36, %37, %38, %39, %40 in 0 : vector<1x8x8xf32>, vector<1x8x8xf32>, vector<1x8x8xf32>, vector<1x8x8xf32>, vector<1x8x8xf32>, vector<1x8x8xf32>, vector<1x8x8xf32>, vector<1x8x8xf32> -> vector<8x8x8xf32>
    %42 = arith.truncf %41 : vector<8x8x8xf32> to vector<8x8x8xbf16>
    %43 = vector.extract_strided_slice %24 {offsets = [0, 32], sizes = [8, 8], strides = [1, 1]} : vector<16x96xf32> to vector<8x8xf32>
    %44 = vector.extract_strided_slice %24 {offsets = [0, 40], sizes = [8, 8], strides = [1, 1]} : vector<16x96xf32> to vector<8x8xf32>
    %45 = vector.extract_strided_slice %24 {offsets = [0, 48], sizes = [8, 8], strides = [1, 1]} : vector<16x96xf32> to vector<8x8xf32>
    %46 = vector.extract_strided_slice %24 {offsets = [0, 56], sizes = [8, 8], strides = [1, 1]} : vector<16x96xf32> to vector<8x8xf32>
    %47 = vector.extract_strided_slice %24 {offsets = [8, 32], sizes = [8, 8], strides = [1, 1]} : vector<16x96xf32> to vector<8x8xf32>
    %48 = vector.extract_strided_slice %24 {offsets = [8, 40], sizes = [8, 8], strides = [1, 1]} : vector<16x96xf32> to vector<8x8xf32>
    %49 = vector.extract_strided_slice %24 {offsets = [8, 48], sizes = [8, 8], strides = [1, 1]} : vector<16x96xf32> to vector<8x8xf32>
    %50 = vector.extract_strided_slice %24 {offsets = [8, 56], sizes = [8, 8], strides = [1, 1]} : vector<16x96xf32> to vector<8x8xf32>
    %51 = vector.shape_cast %43 : vector<8x8xf32> to vector<1x8x8xf32>
    %52 = vector.shape_cast %44 : vector<8x8xf32> to vector<1x8x8xf32>
    %53 = vector.shape_cast %45 : vector<8x8xf32> to vector<1x8x8xf32>
    %54 = vector.shape_cast %46 : vector<8x8xf32> to vector<1x8x8xf32>
    %55 = vector.shape_cast %47 : vector<8x8xf32> to vector<1x8x8xf32>
    %56 = vector.shape_cast %48 : vector<8x8xf32> to vector<1x8x8xf32>
    %57 = vector.shape_cast %49 : vector<8x8xf32> to vector<1x8x8xf32>
    %58 = vector.shape_cast %50 : vector<8x8xf32> to vector<1x8x8xf32>
    %59 = tpu.concatenate %51, %52, %53, %54, %55, %56, %57, %58 in 0 : vector<1x8x8xf32>, vector<1x8x8xf32>, vector<1x8x8xf32>, vector<1x8x8xf32>, vector<1x8x8xf32>, vector<1x8x8xf32>, vector<1x8x8xf32>, vector<1x8x8xf32> -> vector<8x8x8xf32>
    %60 = arith.truncf %59 : vector<8x8x8xf32> to vector<8x8x8xbf16>
    %61 = vector.extract_strided_slice %24 {offsets = [0, 64], sizes = [8, 8], strides = [1, 1]} : vector<16x96xf32> to vector<8x8xf32>
    %62 = vector.extract_strided_slice %24 {offsets = [0, 72], sizes = [8, 8], strides = [1, 1]} : vector<16x96xf32> to vector<8x8xf32>
    %63 = vector.extract_strided_slice %24 {offsets = [0, 80], sizes = [8, 8], strides = [1, 1]} : vector<16x96xf32> to vector<8x8xf32>
    %64 = vector.extract_strided_slice %24 {offsets = [0, 88], sizes = [8, 8], strides = [1, 1]} : vector<16x96xf32> to vector<8x8xf32>
    %65 = vector.extract_strided_slice %24 {offsets = [8, 64], sizes = [8, 8], strides = [1, 1]} : vector<16x96xf32> to vector<8x8xf32>
    %66 = vector.extract_strided_slice %24 {offsets = [8, 72], sizes = [8, 8], strides = [1, 1]} : vector<16x96xf32> to vector<8x8xf32>
    %67 = vector.extract_strided_slice %24 {offsets = [8, 80], sizes = [8, 8], strides = [1, 1]} : vector<16x96xf32> to vector<8x8xf32>
    %68 = vector.extract_strided_slice %24 {offsets = [8, 88], sizes = [8, 8], strides = [1, 1]} : vector<16x96xf32> to vector<8x8xf32>
    %69 = vector.shape_cast %61 : vector<8x8xf32> to vector<1x8x8xf32>
    %70 = vector.shape_cast %62 : vector<8x8xf32> to vector<1x8x8xf32>
    %71 = vector.shape_cast %63 : vector<8x8xf32> to vector<1x8x8xf32>
    %72 = vector.shape_cast %64 : vector<8x8xf32> to vector<1x8x8xf32>
    %73 = vector.shape_cast %65 : vector<8x8xf32> to vector<1x8x8xf32>
    %74 = vector.shape_cast %66 : vector<8x8xf32> to vector<1x8x8xf32>
    %75 = vector.shape_cast %67 : vector<8x8xf32> to vector<1x8x8xf32>
    %76 = vector.shape_cast %68 : vector<8x8xf32> to vector<1x8x8xf32>
    %77 = tpu.concatenate %69, %70, %71, %72, %73, %74, %75, %76 in 0 : vector<1x8x8xf32>, vector<1x8x8xf32>, vector<1x8x8xf32>, vector<1x8x8xf32>, vector<1x8x8xf32>, vector<1x8x8xf32>, vector<1x8x8xf32>, vector<1x8x8xf32> -> vector<8x8x8xf32>
    %78 = arith.truncf %77 : vector<8x8x8xf32> to vector<8x8x8xbf16>
    "tpu.trace_start"() <{level = 10 : i32, message = "bqd,bkd->bqk"}> : () -> ()
    %cst_5 = arith.constant dense<0.000000e+00> : vector<8x8x8xf32>
    %79 = tpu.matmul %42, %60, %cst_5 {dimension_numbers = #tpu.dot_dimension_numbers<[2], [2], [1], [1], [0, 0, 0, 1, 1, 1], [0], [0]>} : vector<8x8x8xbf16>, vector<8x8x8xbf16>, vector<8x8x8xf32> -> vector<8x8x8xf32>
    "tpu.trace_stop"() : () -> ()
    %cst_6 = arith.constant 0.353553385 : f32
    %80 = vector.broadcast %cst_6 : f32 to vector<8x8x8xf32>
    %81 = arith.mulf %79, %80 : vector<8x8x8xf32>
    %cst_7 = arith.constant dense<0xFF800000> : vector<8x8xf32>
    %82 = vector.multi_reduction <maximumf>, %81, %cst_7 [2] : vector<8x8x8xf32> to vector<8x8xf32>
    %83 = vector.shape_cast %82 : vector<8x8xf32> to vector<8x8x1xf32>
    %84 = vector.broadcast %83 : vector<8x8x1xf32> to vector<8x8x8xf32>
    %85 = arith.subf %81, %84 : vector<8x8x8xf32>
    %86 = math.exp %85 : vector<8x8x8xf32>
    %cst_8 = arith.constant dense<0.000000e+00> : vector<8x8xf32>
    %87 = vector.multi_reduction <add>, %86, %cst_8 [2] : vector<8x8x8xf32> to vector<8x8xf32>
    %88 = vector.shape_cast %87 : vector<8x8xf32> to vector<8x8x1xf32>
    %89 = tpu.reciprocal %88 {approx = true} : vector<8x8x1xf32> -> vector<8x8x1xf32>
    %90 = vector.broadcast %89 : vector<8x8x1xf32> to vector<8x8x8xf32>
    %91 = arith.mulf %86, %90 : vector<8x8x8xf32>
    %92 = arith.truncf %91 : vector<8x8x8xf32> to vector<8x8x8xbf16>
    "tpu.trace_start"() <{level = 10 : i32, message = "bqk,bkd->bqd"}> : () -> ()
    %cst_9 = arith.constant dense<0.000000e+00> : vector<8x8x8xf32>
    %93 = tpu.matmul %92, %78, %cst_9 {dimension_numbers = #tpu.dot_dimension_numbers<[2], [1], [1], [2], [0, 0, 0, 1, 1, 2], [0], [0]>} : vector<8x8x8xbf16>, vector<8x8x8xbf16>, vector<8x8x8xf32> -> vector<8x8x8xf32>
    "tpu.trace_stop"() : () -> ()
    %94 = vector.extract_strided_slice %93 {offsets = [0, 0, 0], sizes = [1, 8, 8], strides = [1, 1, 1]} : vector<8x8x8xf32> to vector<1x8x8xf32>
    %95 = vector.shape_cast %94 : vector<1x8x8xf32> to vector<8x8xf32>
    %96 = vector.extract_strided_slice %93 {offsets = [1, 0, 0], sizes = [1, 8, 8], strides = [1, 1, 1]} : vector<8x8x8xf32> to vector<1x8x8xf32>
    %97 = vector.shape_cast %96 : vector<1x8x8xf32> to vector<8x8xf32>
    %98 = vector.extract_strided_slice %93 {offsets = [2, 0, 0], sizes = [1, 8, 8], strides = [1, 1, 1]} : vector<8x8x8xf32> to vector<1x8x8xf32>
    %99 = vector.shape_cast %98 : vector<1x8x8xf32> to vector<8x8xf32>
    %100 = vector.extract_strided_slice %93 {offsets = [3, 0, 0], sizes = [1, 8, 8], strides = [1, 1, 1]} : vector<8x8x8xf32> to vector<1x8x8xf32>
    %101 = vector.shape_cast %100 : vector<1x8x8xf32> to vector<8x8xf32>
    %102 = tpu.concatenate %95, %97, %99, %101 in 1 : vector<8x8xf32>, vector<8x8xf32>, vector<8x8xf32>, vector<8x8xf32> -> vector<8x32xf32>
    %103 = vector.extract_strided_slice %93 {offsets = [4, 0, 0], sizes = [1, 8, 8], strides = [1, 1, 1]} : vector<8x8x8xf32> to vector<1x8x8xf32>
    %104 = vector.shape_cast %103 : vector<1x8x8xf32> to vector<8x8xf32>
    %105 = vector.extract_strided_slice %93 {offsets = [5, 0, 0], sizes = [1, 8, 8], strides = [1, 1, 1]} : vector<8x8x8xf32> to vector<1x8x8xf32>
    %106 = vector.shape_cast %105 : vector<1x8x8xf32> to vector<8x8xf32>
    %107 = vector.extract_strided_slice %93 {offsets = [6, 0, 0], sizes = [1, 8, 8], strides = [1, 1, 1]} : vector<8x8x8xf32> to vector<1x8x8xf32>
    %108 = vector.shape_cast %107 : vector<1x8x8xf32> to vector<8x8xf32>
    %109 = vector.extract_strided_slice %93 {offsets = [7, 0, 0], sizes = [1, 8, 8], strides = [1, 1, 1]} : vector<8x8x8xf32> to vector<1x8x8xf32>
    %110 = vector.shape_cast %109 : vector<1x8x8xf32> to vector<8x8xf32>
    %111 = tpu.concatenate %104, %106, %108, %110 in 1 : vector<8x8xf32>, vector<8x8xf32>, vector<8x8xf32>, vector<8x8xf32> -> vector<8x32xf32>
    %112 = tpu.concatenate %102, %111 in 0 : vector<8x32xf32>, vector<8x32xf32> -> vector<16x32xf32>
    %113 = arith.truncf %112 : vector<16x32xf32> to vector<16x32xbf16>
    %cst_10 = arith.constant dense<0.000000e+00> : vector<16x32xf32>
    %114 = tpu.matmul %113, %3, %cst_10 {dimension_numbers = #tpu.dot_dimension_numbers<[1], [0], [0], [1], [0, 0, 1, 1], [], []>} : vector<16x32xbf16>, vector<32x32xbf16>, vector<16x32xf32> -> vector<16x32xf32>
    %115 = vector.broadcast %9 : vector<1x32xf32> to vector<16x32xf32>
    %116 = arith.addf %114, %115 : vector<16x32xf32>
    %117 = arith.addf %20, %116 : vector<16x32xf32>
    %cst_11 = arith.constant dense<0.000000e+00> : vector<16xf32>
    %118 = vector.multi_reduction <add>, %117, %cst_11 [1] : vector<16x32xf32> to vector<16xf32>
    %119 = vector.shape_cast %118 : vector<16xf32> to vector<16x1xf32>
    %cst_12 = arith.constant 3.200000e+01 : f32
    %120 = vector.broadcast %cst_12 : f32 to vector<16x1xf32>
    %121 = arith.divf %119, %120 : vector<16x1xf32>
    %122 = vector.broadcast %121 : vector<16x1xf32> to vector<16x32xf32>
    %123 = arith.subf %117, %122 : vector<16x32xf32>
    %124 = arith.mulf %123, %123 : vector<16x32xf32>
    %cst_13 = arith.constant dense<0.000000e+00> : vector<16xf32>
    %125 = vector.multi_reduction <add>, %124, %cst_13 [1] : vector<16x32xf32> to vector<16xf32>
    %126 = vector.shape_cast %125 : vector<16xf32> to vector<16x1xf32>
    %cst_14 = arith.constant 3.200000e+01 : f32
    %127 = vector.broadcast %cst_14 : f32 to vector<16x1xf32>
    %128 = arith.divf %126, %127 : vector<16x1xf32>
    %129 = vector.broadcast %121 : vector<16x1xf32> to vector<16x32xf32>
    %130 = arith.subf %117, %129 : vector<16x32xf32>
    %cst_15 = arith.constant 9.99999997E-7 : f32
    %131 = vector.broadcast %cst_15 : f32 to vector<16x1xf32>
    %132 = arith.addf %128, %131 : vector<16x1xf32>
    %133 = math.rsqrt %132 : vector<16x1xf32>
    %134 = vector.broadcast %133 : vector<16x1xf32> to vector<16x32xf32>
    %135 = arith.mulf %130, %134 : vector<16x32xf32>
    %136 = vector.broadcast %10 : vector<1x32xf32> to vector<16x32xf32>
    %137 = arith.mulf %135, %136 : vector<16x32xf32>
    %138 = vector.broadcast %11 : vector<1x32xf32> to vector<16x32xf32>
    %139 = arith.addf %137, %138 : vector<16x32xf32>
    %140 = arith.truncf %139 : vector<16x32xf32> to vector<16x32xbf16>
    %cst_16 = arith.constant dense<0.000000e+00> : vector<16x64xf32>
    %141 = tpu.matmul %140, %4, %cst_16 {dimension_numbers = #tpu.dot_dimension_numbers<[1], [0], [0], [1], [0, 0, 1, 1], [], []>} : vector<16x32xbf16>, vector<32x64xbf16>, vector<16x64xf32> -> vector<16x64xf32>
    %142 = vector.broadcast %12 : vector<1x64xf32> to vector<16x64xf32>
    %143 = arith.addf %141, %142 : vector<16x64xf32>
    %cst_17 = arith.constant 0.000000e+00 : f32
    %144 = vector.broadcast %cst_17 : f32 to vector<16x64xf32>
    %145 = arith.maximumf %143, %144 : vector<16x64xf32>
    %146 = arith.truncf %145 : vector<16x64xf32> to vector<16x64xbf16>
    %cst_18 = arith.constant dense<0.000000e+00> : vector<16x32xf32>
    %147 = tpu.matmul %146, %5, %cst_18 {dimension_numbers = #tpu.dot_dimension_numbers<[1], [1], [0], [0], [0, 0, 1, 0], [], []>} : vector<16x64xbf16>, vector<32x64xbf16>, vector<16x32xf32> -> vector<16x32xf32>
    %148 = vector.broadcast %13 : vector<1x32xf32> to vector<16x32xf32>
    %149 = arith.addf %147, %148 : vector<16x32xf32>
    %150 = arith.addf %139, %149 : vector<16x32xf32>
    %cst_19 = arith.constant dense<0.000000e+00> : vector<16xf32>
    %151 = vector.multi_reduction <add>, %150, %cst_19 [1] : vector<16x32xf32> to vector<16xf32>
    %152 = vector.shape_cast %151 : vector<16xf32> to vector<16x1xf32>
    %cst_20 = arith.constant 3.200000e+01 : f32
    %153 = vector.broadcast %cst_20 : f32 to vector<16x1xf32>
    %154 = arith.divf %152, %153 : vector<16x1xf32>
    %155 = vector.broadcast %154 : vector<16x1xf32> to vector<16x32xf32>
    %156 = arith.subf %150, %155 : vector<16x32xf32>
    %157 = arith.mulf %156, %156 : vector<16x32xf32>
    %cst_21 = arith.constant dense<0.000000e+00> : vector<16xf32>
    %158 = vector.multi_reduction <add>, %157, %cst_21 [1] : vector<16x32xf32> to vector<16xf32>
    %159 = vector.shape_cast %158 : vector<16xf32> to vector<16x1xf32>
    %cst_22 = arith.constant 3.200000e+01 : f32
    %160 = vector.broadcast %cst_22 : f32 to vector<16x1xf32>
    %161 = arith.divf %159, %160 : vector<16x1xf32>
    %162 = vector.broadcast %154 : vector<16x1xf32> to vector<16x32xf32>
    %163 = arith.subf %150, %162 : vector<16x32xf32>
    %cst_23 = arith.constant 9.99999997E-7 : f32
    %164 = vector.broadcast %cst_23 : f32 to vector<16x1xf32>
    %165 = arith.addf %161, %164 : vector<16x1xf32>
    %166 = math.rsqrt %165 : vector<16x1xf32>
    %167 = vector.broadcast %166 : vector<16x1xf32> to vector<16x32xf32>
    %168 = arith.mulf %163, %167 : vector<16x32xf32>
    %169 = vector.broadcast %14 : vector<1x32xf32> to vector<16x32xf32>
    %170 = arith.mulf %168, %169 : vector<16x32xf32>
    %171 = vector.broadcast %15 : vector<1x32xf32> to vector<16x32xf32>
    %172 = arith.addf %170, %171 : vector<16x32xf32>
    %173 = vector.extract_strided_slice %172 {offsets = [0, 0], sizes = [8, 32], strides = [1, 1]} : vector<16x32xf32> to vector<8x32xf32>
    %cst_24 = arith.constant dense<0.000000e+00> : vector<32xf32>
    %174 = vector.multi_reduction <add>, %173, %cst_24 [0] : vector<8x32xf32> to vector<32xf32>
    %175 = vector.shape_cast %174 : vector<32xf32> to vector<1x32xf32>
    %cst_25 = arith.constant 8.000000e+00 : f32
    %176 = vector.broadcast %cst_25 : f32 to vector<1x32xf32>
    %177 = arith.divf %175, %176 : vector<1x32xf32>
    %178 = vector.extract_strided_slice %172 {offsets = [8, 0], sizes = [8, 32], strides = [1, 1]} : vector<16x32xf32> to vector<8x32xf32>
    %cst_26 = arith.constant dense<0.000000e+00> : vector<32xf32>
    %179 = vector.multi_reduction <add>, %178, %cst_26 [0] : vector<8x32xf32> to vector<32xf32>
    %180 = vector.shape_cast %179 : vector<32xf32> to vector<1x32xf32>
    %cst_27 = arith.constant 8.000000e+00 : f32
    %181 = vector.broadcast %cst_27 : f32 to vector<1x32xf32>
    %182 = arith.divf %180, %181 : vector<1x32xf32>
    %183 = tpu.concatenate %177, %182 in 0 : vector<1x32xf32>, vector<1x32xf32> -> vector<2x32xf32>
    %184 = arith.truncf %183 : vector<2x32xf32> to vector<2x32xbf16>
    %cst_28 = arith.constant dense<0.000000e+00> : vector<2x32xf32>
    %185 = tpu.matmul %184, %6, %cst_28 {dimension_numbers = #tpu.dot_dimension_numbers<[1], [0], [0], [1], [0, 0, 1, 1], [], []>} : vector<2x32xbf16>, vector<32x32xbf16>, vector<2x32xf32> -> vector<2x32xf32>
    %186 = vector.broadcast %16 : vector<1x32xf32> to vector<2x32xf32>
    %187 = arith.addf %185, %186 : vector<2x32xf32>
    %cst_29 = arith.constant 0.000000e+00 : f32
    %188 = vector.broadcast %cst_29 : f32 to vector<2x32xf32>
    %189 = arith.maximumf %187, %188 : vector<2x32xf32>
    %190 = arith.truncf %189 : vector<2x32xf32> to vector<2x32xbf16>
    %cst_30 = arith.constant dense<0.000000e+00> : vector<2x128xf32>
    %191 = tpu.matmul %190, %7, %cst_30 {dimension_numbers = #tpu.dot_dimension_numbers<[1], [0], [0], [1], [0, 0, 1, 1], [], []>} : vector<2x32xbf16>, vector<32x128xbf16>, vector<2x128xf32> -> vector<2x128xf32>
    %192 = vector.broadcast %17 : vector<1x128xf32> to vector<2x128xf32>
    %193 = arith.addf %191, %192 : vector<2x128xf32>
    %c0_31 = arith.constant 0 : index
    %c0_32 = arith.constant 0 : index
    %194 = vector.load %arg3[%c0_31, %c0_32] : memref<2x128xf32, #tpu.memory_space<vmem>>, vector<2x128xf32>
    tpu.vector_store %arg3[%c0_31, %c0_32], %193 {strides = array<i32>} : memref<2x128xf32, #tpu.memory_space<vmem>>, vector<2x128xf32>,
    return
  }
}

</mosaic_0001>

<llo_original>
// kernel: neurallog_forward.1
$region0: #{neurallog_forward.1}
  #allocation0 [shape = 'u32[]', space=smem, size = 0x4, offset = 0x4, fixed_abs, tag = 'smem constant byte address 0x4 - core index']
  #allocation1 [shape = 'u32[144,128]{1,0:T(1,128)}', space=vmem, size = 0x12000, scoped, tag = 'internal scratch']
  %s0 = inlined_call_operand.hbm [shape: f32[16,32], index: 0, kind: input, shape index: {}]
  %s1 = inlined_call_operand.hbm [shape: bf16[32,768], index: 1, kind: input, shape index: {}]
  %s2 = inlined_call_operand.hbm [shape: f32[32,128], index: 2, kind: input, shape index: {}]
  %s3 = inlined_call_operand.hbm [shape: f32[2,128], index: 3, kind: output, shape index: {}]
  %s4 = sld [smem:[#allocation0]]
  $region34: #{neurallog_forward.1} parent=0
    _
  %s6 = ssub.s32 1, %s4
  %s7 = scalar_select 0, %s6, %s4
  $region1: #{neurallog_forward.1} parent=0
    #allocation2 [shape = 'u8[8192]{0}', space=vmem, size = 0x2000, scoped, tag = 'input window, operand 0, single buffered']
    #allocation3 [shape = 's32[1]{0}', space=sflag, size = 0x4, scoped, tag = 'scoped memory for neurallog_forward.1']
    #allocation4 [shape = 's32[1]{0}', space=sflag, size = 0x4, scoped, tag = 'scoped memory for neurallog_forward.1']
    #allocation5 [shape = 'u8[49152]{0}', space=vmem, size = 0xc000, scoped, tag = 'input window, operand 1, single buffered']
    #allocation6 [shape = 's32[1]{0}', space=sflag, size = 0x4, scoped, tag = 'scoped memory for neurallog_forward.1']
    #allocation7 [shape = 'u8[16384]{0}', space=vmem, size = 0x4000, scoped, tag = 'input window, operand 2, single buffered']
    #allocation8 [shape = 'u8[1024]{0}', space=vmem, size = 0x400, scoped, tag = 'output window, operand 0, single buffered']
    %8 = vsyncpa [#allocation3], 0
    %9 = vsyncpa [#allocation6], 0
    %10 = vsyncpa [#allocation4], 0
    // Predicated region
    $region2: #{neurallog_forward.1} parent=1 // pred_check
      _
    $region3: #{neurallog_forward.1} parent=1 // pred_check_branch
      %12 = sbr.rel (0) target = $region5
    $region4: #{neurallog_forward.1} parent=1 // pred_region
      %s14 = ssub.s32 256, 256
      %15 = vsyncadd [#allocation3], %s14
      %s16 = sshll.u32 [#allocation2], 4
      %s17 = int_to_ptr.vmem [resolvable:$true] %s16
      %22 = dma.hbm_to_vmem [thread:$0]  %s0, 256, %s17, [#allocation3], 128, 128, 8
    $region5: #{neurallog_forward.1} parent=1 // pred_fallthru
      _
    // Predicated region
    $region6: #{neurallog_forward.1} parent=1 // pred_check
      _
    $region7: #{neurallog_forward.1} parent=1 // pred_check_branch
      %24 = sbr.rel (0) target = $region9
    $region8: #{neurallog_forward.1} parent=1 // pred_region
      %s26 = ssub.s32 1536, 1536
      %27 = vsyncadd [#allocation6], %s26
      %s28 = sshll.u32 [#allocation5], 4
      %s29 = int_to_ptr.vmem [resolvable:$true] %s28
      %34 = dma.hbm_to_vmem [thread:$0]  %s1, 1536, %s29, [#allocation6], 384, 384, 24
    $region9: #{neurallog_forward.1} parent=1 // pred_fallthru
      _
    // Predicated region
    $region10: #{neurallog_forward.1} parent=1 // pred_check
      _
    $region11: #{neurallog_forward.1} parent=1 // pred_check_branch
      %36 = sbr.rel (0) target = $region13
    $region12: #{neurallog_forward.1} parent=1 // pred_region
      %s38 = ssub.s32 512, 512
      %39 = vsyncadd [#allocation6], %s38
      %s40 = sshll.u32 [#allocation7], 4
      %s41 = int_to_ptr.vmem [resolvable:$true] %s40
      %46 = dma.hbm_to_vmem [thread:$0]  %s2, 512, %s41, [#allocation6], 128, 128, 8
    $region13: #{neurallog_forward.1} parent=1 // pred_fallthru
      _
    // Predicated region
    $region14: #{neurallog_forward.1} parent=1 // pred_check
      _
    $region15: #{neurallog_forward.1} parent=1 // pred_check_branch
      %48 = sbr.rel (0) target = $region17
    $region16: #{neurallog_forward.1} parent=1 // pred_region
      %49 = dma.done [#allocation3], 256
    $region17: #{neurallog_forward.1} parent=1 // pred_fallthru
      _
    // Predicated region
    $region18: #{neurallog_forward.1} parent=1 // pred_check
      _
    $region19: #{neurallog_forward.1} parent=1 // pred_check_branch
      %51 = sbr.rel (0) target = $region21
    $region20: #{neurallog_forward.1} parent=1 // pred_region
      %52 = dma.done [#allocation6], 1536
    $region21: #{neurallog_forward.1} parent=1 // pred_fallthru
      _
    // Predicated region
    $region22: #{neurallog_forward.1} parent=1 // pred_check
      _
    $region23: #{neurallog_forward.1} parent=1 // pred_check_branch
      %54 = sbr.rel (0) target = $region25
    $region24: #{neurallog_forward.1} parent=1 // pred_region
      %55 = dma.done [#allocation6], 512
    $region25: #{neurallog_forward.1} parent=1 // pred_fallthru
      _
    %v57 = vld [vmem:[#allocation5] sm:$0xff]
    %v58 = vld [vmem:[#allocation5 + $0x8] sm:$0xff]
    %v59 = vld [vmem:[#allocation5 + $0x10] sm:$0xff]
    %v60 = vld [vmem:[#allocation5 + $0x18] sm:$0xff]
    %v61 = vld [vmem:[#allocation5 + $0x20] sm:$0xff]
    %v62 = vld [vmem:[#allocation5 + $0x28] sm:$0xff]
    %v63 = vld [vmem:[#allocation5 + $0x30] sm:$0xff]
    %v64 = vld [vmem:[#allocation5 + $0x38] sm:$0xff]
    %v65 = vld [vmem:[#allocation5 + $0x40] sm:$0xff]
    %v66 = vld [vmem:[#allocation5 + $0x48] sm:$0xff]
    %v67 = vld [vmem:[#allocation5 + $0x50] sm:$0xff]
    %v68 = vld [vmem:[#allocation5 + $0x58] sm:$0xff]
    %v69 = vld [vmem:[#allocation7] sm:$0xff]
    %v70 = vld [vmem:[#allocation7 + $0x8] sm:$0xff]
    %v71 = vld [vmem:[#allocation7 + $0x10] sm:$0xff]
    %v72 = vld [vmem:[#allocation7 + $0x18] sm:$0xff]
    %v73 = vld [vmem:[#allocation2] sm:$0xff]
    %v74 = vld [vmem:[#allocation2 + $0x8] sm:$0xff]
    %v75 = vadd.f32 %v73, %v71
    %v76 = vadd.f32 %v74, %v72
    %v77 = vpack.c.bf16 %v76, %v75
    %v78 = vlaneseq
    %v79 = vshrl.u32 %v78, 7
    %v80 = vsub.s32 0, %v79
    %v81 = vrot.slane %v69, %v80
    %v86 = vunpack.c.l.b16 %v57
    %v87 = vunpack.c.l.b16 %v60
    %v88 = vunpack.c.l.b16 %v63
    %v89 = vunpack.c.l.b16 %v66
    %v90 = vpack.c.b16 %v87, %v86
    %v91 = vpack.c.b16 %v89, %v88
    %vm94 = vcmask 261120
    %v96 = vsel %vm94, %v77, 0
    %98 = vmatprep.subr.bf16.mxu0 0
    %99 = vmatpush1.bf16.msra.mxu0 %v90
    %100 = vmatprep.subr.bf16.mxu0 0
    %101 = vmatpush1.bf16.msra.mxu0 %v91
    %102 = vmatprep.subr.bf16.mxu0 0
    %103 = vmatpush1.bf16.msra.mxu0 0
    %104 = vmatprep.subr.bf16.mxu0 0
    %105 = vmatpush1.bf16.msra.mxu0 0
    %106 = vmatprep.subr.bf16.mxu0 0
    %107 = vmatpush1.bf16.msra.mxu0 0
    %108 = vmatprep.subr.bf16.mxu0 0
    %109 = vmatpush1.bf16.msra.mxu0 0
    %110 = vmatprep.subr.bf16.mxu0 0
    %111 = vmatpush1.bf16.msra.mxu0 0
    %112 = vmatprep.subr.bf16.mxu0 0
    %113 = vmatpush1.bf16.msra.mxu0 0
    %114 = vmatprep.subr.bf16.mxu0 0
    %115 = vmatpush1.bf16.msra.mxu0 0
    %116 = vmatprep.subr.bf16.mxu0 0
    %117 = vmatpush1.bf16.msra.mxu0 0
    %118 = vmatprep.subr.bf16.mxu0 0
    %119 = vmatpush1.bf16.msra.mxu0 0
    %120 = vmatprep.subr.bf16.mxu0 0
    %121 = vmatpush1.bf16.msra.mxu0 0
    %122 = vmatprep.subr.bf16.mxu0 0
    %123 = vmatpush1.bf16.msra.mxu0 0
    %124 = vmatprep.subr.bf16.mxu0 0
    %125 = vmatpush1.bf16.msra.mxu0 0
    %126 = vmatprep.subr.bf16.mxu0 0
    %127 = vmatpush1.bf16.msra.mxu0 0
    %128 = vmatprep.subr.bf16.mxu0 0
    %129 = vmatpush1.bf16.msra.mxu0 0
    %130 = vmatprep.mubr.bf16.mxu0 0
    %131 = vmatmul.mubr.bf16.gmra.mrb[0].mxu0 %v96
    %v132 = vpop.f32.mrb[0].mxu0
    %v133 = vadd.f32 %v81, %v132
    %v134 = vpop.f32.mrb[0].mxu0
    %v135 = vpop.f32.mrb[0].mxu0
    %v136 = vadd.f32 %v81, %v135
    %v137 = vpop.f32.mrb[0].mxu0
    %138 = vdwg.mxu0
    %140 = vrot.lane.b32.xlu0 %v133, 120
    %v141 = vpop.permute.xlu0 %140
    %143 = vrot.lane.b32.xlu0 %v133, 112
    %v144 = vpop.permute.xlu0 %143
    %146 = vrot.lane.b32.xlu0 %v133, 104
    %v147 = vpop.permute.xlu0 %146
    %150 = vrot.lane.b32.xlu0 %v136, 120
    %v151 = vpop.permute.xlu0 %150
    %153 = vrot.lane.b32.xlu0 %v136, 112
    %v154 = vpop.permute.xlu0 %153
    %156 = vrot.lane.b32.xlu0 %v136, 104
    %v157 = vpop.permute.xlu0 %156
    %v159 = vpack.c.bf16 %v133, %v133
    %v160 = vpack.c.bf16 %v141, %v141
    %v161 = vpack.c.bf16 %v144, %v144
    %v162 = vpack.c.bf16 %v147, %v147
    %v163 = vpack.c.bf16 %v136, %v136
    %v164 = vpack.c.bf16 %v151, %v151
    %v165 = vpack.c.bf16 %v154, %v154
    %v166 = vpack.c.bf16 %v157, %v157
    %168 = vrot.lane.b32.xlu0 %v159, 96
    %v169 = vpop.permute.xlu0 %168
    %vm170 = vcmask 64512
    %v172 = vsel %vm170, %v159, 0
    %v175 = vsel %vm170, %v169, 0
    %177 = vmatprep.subr.bf16.mxu0 0
    %178 = vmatpush1.bf16.xpose.msra.mxu0 %v175
    %179 = vmatprep.subr.bf16.mxu0 0
    %180 = vmatpush1.bf16.xpose.msra.mxu0 0
    %181 = vmatprep.subr.bf16.mxu0 0
    %182 = vmatpush1.bf16.xpose.msra.mxu0 0
    %183 = vmatprep.subr.bf16.mxu0 0
    %184 = vmatpush1.bf16.xpose.msra.mxu0 0
    %185 = vmatprep.subr.bf16.mxu0 0
    %186 = vmatpush1.bf16.xpose.msra.mxu0 0
    %187 = vmatprep.subr.bf16.mxu0 0
    %188 = vmatpush1.bf16.xpose.msra.mxu0 0
    %189 = vmatprep.subr.bf16.mxu0 0
    %190 = vmatpush1.bf16.xpose.msra.mxu0 0
    %191 = vmatprep.subr.bf16.mxu0 0
    %192 = vmatpush1.bf16.xpose.msra.mxu0 0
    %193 = vmatprep.subr.bf16.mxu0 0
    %194 = vmatpush1.bf16.xpose.msra.mxu0 0
    %195 = vmatprep.subr.bf16.mxu0 0
    %196 = vmatpush1.bf16.xpose.msra.mxu0 0
    %197 = vmatprep.subr.bf16.mxu0 0
    %198 = vmatpush1.bf16.xpose.msra.mxu0 0
    %199 = vmatprep.subr.bf16.mxu0 0
    %200 = vmatpush1.bf16.xpose.msra.mxu0 0
    %201 = vmatprep.subr.bf16.mxu0 0
    %202 = vmatpush1.bf16.xpose.msra.mxu0 0
    %203 = vmatprep.subr.bf16.mxu0 0
    %204 = vmatpush1.bf16.xpose.msra.mxu0 0
    %205 = vmatprep.subr.bf16.mxu0 0
    %206 = vmatpush1.bf16.xpose.msra.mxu0 0
    %207 = vmatprep.subr.bf16.mxu0 0
    %208 = vmatpush1.bf16.xpose.msra.mxu0 0
    %209 = vmatprep.mubr.bf16.mxu0 0
    %210 = vmatmul.mubr.bf16.gmra.mrb[0].mxu0 %v172
    %v211 = vpop.f32.mrb[0].mxu0
    %v212 = vadd.f32 0.0, %v211
    %v213 = vpop.f32.mrb[0].mxu0
    %v214 = vpop.f32.mrb[0].mxu0
    %v215 = vpop.f32.mrb[0].mxu0
    %216 = vdwg.mxu0
    %218 = vrot.lane.b32.xlu0 %v160, 96
    %v219 = vpop.permute.xlu0 %218
    %v221 = vsel %vm170, %v160, 0
    %v224 = vsel %vm170, %v219, 0
    %226 = vmatprep.subr.bf16.mxu0 0
    %227 = vmatpush1.bf16.xpose.msra.mxu0 %v224
    %228 = vmatprep.subr.bf16.mxu0 0
    %229 = vmatpush1.bf16.xpose.msra.mxu0 0
    %230 = vmatprep.subr.bf16.mxu0 0
    %231 = vmatpush1.bf16.xpose.msra.mxu0 0
    %232 = vmatprep.subr.bf16.mxu0 0
    %233 = vmatpush1.bf16.xpose.msra.mxu0 0
    %234 = vmatprep.subr.bf16.mxu0 0
    %235 = vmatpush1.bf16.xpose.msra.mxu0 0
    %236 = vmatprep.subr.bf16.mxu0 0
    %237 = vmatpush1.bf16.xpose.msra.mxu0 0
    %238 = vmatprep.subr.bf16.mxu0 0
    %239 = vmatpush1.bf16.xpose.msra.mxu0 0
    %240 = vmatprep.subr.bf16.mxu0 0
    %241 = vmatpush1.bf16.xpose.msra.mxu0 0
    %242 = vmatprep.subr.bf16.mxu0 0
    %243 = vmatpush1.bf16.xpose.msra.mxu0 0
    %244 = vmatprep.subr.bf16.mxu0 0
    %245 = vmatpush1.bf16.xpose.msra.mxu0 0
    %246 = vmatprep.subr.bf16.mxu0 0
    %247 = vmatpush1.bf16.xpose.msra.mxu0 0
    %248 = vmatprep.subr.bf16.mxu0 0
    %249 = vmatpush1.bf16.xpose.msra.mxu0 0
    %250 = vmatprep.subr.bf16.mxu0 0
    %251 = vmatpush1.bf16.xpose.msra.mxu0 0
    %252 = vmatprep.subr.bf16.mxu0 0
    %253 = vmatpush1.bf16.xpose.msra.mxu0 0
    %254 = vmatprep.subr.bf16.mxu0 0
    %255 = vmatpush1.bf16.xpose.msra.mxu0 0
    %256 = vmatprep.subr.bf16.mxu0 0
    %257 = vmatpush1.bf16.xpose.msra.mxu0 0
    %258 = vmatprep.mubr.bf16.mxu0 0
    %259 = vmatmul.mubr.bf16.gmra.mrb[0].mxu0 %v221
    %v260 = vpop.f32.mrb[0].mxu0
    %v261 = vadd.f32 0.0, %v260
    %v262 = vpop.f32.mrb[0].mxu0
    %v263 = vpop.f32.mrb[0].mxu0
    %v264 = vpop.f32.mrb[0].mxu0
    %265 = vdwg.mxu0
    %267 = vrot.lane.b32.xlu0 %v161, 96
    %v268 = vpop.permute.xlu0 %267
    %v270 = vsel %vm170, %v161, 0
    %v273 = vsel %vm170, %v268, 0
    %275 = vmatprep.subr.bf16.mxu0 0
    %276 = vmatpush1.bf16.xpose.msra.mxu0 %v273
    %277 = vmatprep.subr.bf16.mxu0 0
    %278 = vmatpush1.bf16.xpose.msra.mxu0 0
    %279 = vmatprep.subr.bf16.mxu0 0
    %280 = vmatpush1.bf16.xpose.msra.mxu0 0
    %281 = vmatprep.subr.bf16.mxu0 0
    %282 = vmatpush1.bf16.xpose.msra.mxu0 0
    %283 = vmatprep.subr.bf16.mxu0 0
    %284 = vmatpush1.bf16.xpose.msra.mxu0 0
    %285 = vmatprep.subr.bf16.mxu0 0
    %286 = vmatpush1.bf16.xpose.msra.mxu0 0
    %287 = vmatprep.subr.bf16.mxu0 0
    %288 = vmatpush1.bf16.xpose.msra.mxu0 0
    %289 = vmatprep.subr.bf16.mxu0 0
    %290 = vmatpush1.bf16.xpose.msra.mxu0 0
    %291 = vmatprep.subr.bf16.mxu0 0
    %292 = vmatpush1.bf16.xpose.msra.mxu0 0
    %293 = vmatprep.subr.bf16.mxu0 0
    %294 = vmatpush1.bf16.xpose.msra.mxu0 0
    %295 = vmatprep.subr.bf16.mxu0 0
    %296 = vmatpush1.bf16.xpose.msra.mxu0 0
    %297 = vmatprep.subr.bf16.mxu0 0
    %298 = vmatpush1.bf16.xpose.msra.mxu0 0
    %299 = vmatprep.subr.bf16.mxu0 0
    %300 = vmatpush1.bf16.xpose.msra.mxu0 0
    %301 = vmatprep.subr.bf16.mxu0 0
    %302 = vmatpush1.bf16.xpose.msra.mxu0 0
    %303 = vmatprep.subr.bf16.mxu0 0
    %304 = vmatpush1.bf16.xpose.msra.mxu0 0
    %305 = vmatprep.subr.bf16.mxu0 0
    %306 = vmatpush1.bf16.xpose.msra.mxu0 0
    %307 = vmatprep.mubr.bf16.mxu0 0
    %308 = vmatmul.mubr.bf16.gmra.mrb[0].mxu0 %v270
    %v309 = vpop.f32.mrb[0].mxu0
    %v310 = vadd.f32 0.0, %v309
    %v311 = vpop.f32.mrb[0].mxu0
    %v312 = vpop.f32.mrb[0].mxu0
    %v313 = vpop.f32.mrb[0].mxu0
    %314 = vdwg.mxu0
    %316 = vrot.lane.b32.xlu0 %v162, 96
    %v317 = vpop.permute.xlu0 %316
    %v319 = vsel %vm170, %v162, 0
    %v322 = vsel %vm170, %v317, 0
    %324 = vmatprep.subr.bf16.mxu0 0
    %325 = vmatpush1.bf16.xpose.msra.mxu0 %v322
    %326 = vmatprep.subr.bf16.mxu0 0
    %327 = vmatpush1.bf16.xpose.msra.mxu0 0
    %328 = vmatprep.subr.bf16.mxu0 0
    %329 = vmatpush1.bf16.xpose.msra.mxu0 0
    %330 = vmatprep.subr.bf16.mxu0 0
    %331 = vmatpush1.bf16.xpose.msra.mxu0 0
    %332 = vmatprep.subr.bf16.mxu0 0
    %333 = vmatpush1.bf16.xpose.msra.mxu0 0
    %334 = vmatprep.subr.bf16.mxu0 0
    %335 = vmatpush1.bf16.xpose.msra.mxu0 0
    %336 = vmatprep.subr.bf16.mxu0 0
    %337 = vmatpush1.bf16.xpose.msra.mxu0 0
    %338 = vmatprep.subr.bf16.mxu0 0
    %339 = vmatpush1.bf16.xpose.msra.mxu0 0
    %340 = vmatprep.subr.bf16.mxu0 0
    %341 = vmatpush1.bf16.xpose.msra.mxu0 0
    %342 = vmatprep.subr.bf16.mxu0 0
    %343 = vmatpush1.bf16.xpose.msra.mxu0 0
    %344 = vmatprep.subr.bf16.mxu0 0
    %345 = vmatpush1.bf16.xpose.msra.mxu0 0
    %346 = vmatprep.subr.bf16.mxu0 0
    %347 = vmatpush1.bf16.xpose.msra.mxu0 0
    %348 = vmatprep.subr.bf16.mxu0 0
    %349 = vmatpush1.bf16.xpose.msra.mxu0 0
    %350 = vmatprep.subr.bf16.mxu0 0
    %351 = vmatpush1.bf16.xpose.msra.mxu0 0
    %352 = vmatprep.subr.bf16.mxu0 0
    %353 = vmatpush1.bf16.xpose.msra.mxu0 0
    %354 = vmatprep.subr.bf16.mxu0 0
    %355 = vmatpush1.bf16.xpose.msra.mxu0 0
    %356 = vmatprep.mubr.bf16.mxu0 0
    %357 = vmatmul.mubr.bf16.gmra.mrb[0].mxu0 %v319
    %v358 = vpop.f32.mrb[0].mxu0
    %v359 = vadd.f32 0.0, %v358
    %v360 = vpop.f32.mrb[0].mxu0
    %v361 = vpop.f32.mrb[0].mxu0
    %v362 = vpop.f32.mrb[0].mxu0
    %363 = vdwg.mxu0
    %365 = vrot.lane.b32.xlu0 %v163, 96
    %v366 = vpop.permute.xlu0 %365
    %v368 = vsel %vm170, %v163, 0
    %v371 = vsel %vm170, %v366, 0
    %373 = vmatprep.subr.bf16.mxu0 0
    %374 = vmatpush1.bf16.xpose.msra.mxu0 %v371
    %375 = vmatprep.subr.bf16.mxu0 0
    %376 = vmatpush1.bf16.xpose.msra.mxu0 0
    %377 = vmatprep.subr.bf16.mxu0 0
    %378 = vmatpush1.bf16.xpose.msra.mxu0 0
    %379 = vmatprep.subr.bf16.mxu0 0
    %380 = vmatpush1.bf16.xpose.msra.mxu0 0
    %381 = vmatprep.subr.bf16.mxu0 0
    %382 = vmatpush1.bf16.xpose.msra.mxu0 0
    %383 = vmatprep.subr.bf16.mxu0 0
    %384 = vmatpush1.bf16.xpose.msra.mxu0 0
    %385 = vmatprep.subr.bf16.mxu0 0
    %386 = vmatpush1.bf16.xpose.msra.mxu0 0
    %387 = vmatprep.subr.bf16.mxu0 0
    %388 = vmatpush1.bf16.xpose.msra.mxu0 0
    %389 = vmatprep.subr.bf16.mxu0 0
    %390 = vmatpush1.bf16.xpose.msra.mxu0 0
    %391 = vmatprep.subr.bf16.mxu0 0
    %392 = vmatpush1.bf16.xpose.msra.mxu0 0
    %393 = vmatprep.subr.bf16.mxu0 0
    %394 = vmatpush1.bf16.xpose.msra.mxu0 0
    %395 = vmatprep.subr.bf16.mxu0 0
    %396 = vmatpush1.bf16.xpose.msra.mxu0 0
    %397 = vmatprep.subr.bf16.mxu0 0
    %398 = vmatpush1.bf16.xpose.msra.mxu0 0
    %399 = vmatprep.subr.bf16.mxu0 0
    %400 = vmatpush1.bf16.xpose.msra.mxu0 0
    %401 = vmatprep.subr.bf16.mxu0 0
    %402 = vmatpush1.bf16.xpose.msra.mxu0 0
    %403 = vmatprep.subr.bf16.mxu0 0
    %404 = vmatpush1.bf16.xpose.msra.mxu0 0
    %405 = vmatprep.mubr.bf16.mxu0 0
    %406 = vmatmul.mubr.bf16.gmra.mrb[0].mxu0 %v368
    %v407 = vpop.f32.mrb[0].mxu0
    %v408 = vadd.f32 0.0, %v407
    %v409 = vpop.f32.mrb[0].mxu0
    %v410 = vpop.f32.mrb[0].mxu0
    %v411 = vpop.f32.mrb[0].mxu0
    %412 = vdwg.mxu0
    %414 = vrot.lane.b32.xlu0 %v164, 96
    %v415 = vpop.permute.xlu0 %414
    %v417 = vsel %vm170, %v164, 0
    %v420 = vsel %vm170, %v415, 0
    %422 = vmatprep.subr.bf16.mxu0 0
    %423 = vmatpush1.bf16.xpose.msra.mxu0 %v420
    %424 = vmatprep.subr.bf16.mxu0 0
    %425 = vmatpush1.bf16.xpose.msra.mxu0 0
    %426 = vmatprep.subr.bf16.mxu0 0
    %427 = vmatpush1.bf16.xpose.msra.mxu0 0
    %428 = vmatprep.subr.bf16.mxu0 0
    %429 = vmatpush1.bf16.xpose.msra.mxu0 0
    %430 = vmatprep.subr.bf16.mxu0 0
    %431 = vmatpush1.bf16.xpose.msra.mxu0 0
    %432 = vmatprep.subr.bf16.mxu0 0
    %433 = vmatpush1.bf16.xpose.msra.mxu0 0
    %434 = vmatprep.subr.bf16.mxu0 0
    %435 = vmatpush1.bf16.xpose.msra.mxu0 0
    %436 = vmatprep.subr.bf16.mxu0 0
    %437 = vmatpush1.bf16.xpose.msra.mxu0 0
    %438 = vmatprep.subr.bf16.mxu0 0
    %439 = vmatpush1.bf16.xpose.msra.mxu0 0
    %440 = vmatprep.subr.bf16.mxu0 0
    %441 = vmatpush1.bf16.xpose.msra.mxu0 0
    %442 = vmatprep.subr.bf16.mxu0 0
    %443 = vmatpush1.bf16.xpose.msra.mxu0 0
    %444 = vmatprep.subr.bf16.mxu0 0
    %445 = vmatpush1.bf16.xpose.msra.mxu0 0
    %446 = vmatprep.subr.bf16.mxu0 0
    %447 = vmatpush1.bf16.xpose.msra.mxu0 0
    %448 = vmatprep.subr.bf16.mxu0 0
    %449 = vmatpush1.bf16.xpose.msra.mxu0 0
    %450 = vmatprep.subr.bf16.mxu0 0
    %451 = vmatpush1.bf16.xpose.msra.mxu0 0
    %452 = vmatprep.subr.bf16.mxu0 0
    %453 = vmatpush1.bf16.xpose.msra.mxu0 0
    %454 = vmatprep.mubr.bf16.mxu0 0
    %455 = vmatmul.mubr.bf16.gmra.mrb[0].mxu0 %v417
    %v456 = vpop.f32.mrb[0].mxu0
    %v457 = vadd.f32 0.0, %v456
    %v458 = vpop.f32.mrb[0].mxu0
    %v459 = vpop.f32.mrb[0].mxu0
    %v460 = vpop.f32.mrb[0].mxu0
    %461 = vdwg.mxu0
    %463 = vrot.lane.b32.xlu0 %v165, 96
    %v464 = vpop.permute.xlu0 %463
    %v466 = vsel %vm170, %v165, 0
    %v469 = vsel %vm170, %v464, 0
    %471 = vmatprep.subr.bf16.mxu0 0
    %472 = vmatpush1.bf16.xpose.msra.mxu0 %v469
    %473 = vmatprep.subr.bf16.mxu0 0
    %474 = vmatpush1.bf16.xpose.msra.mxu0 0
    %475 = vmatprep.subr.bf16.mxu0 0
    %476 = vmatpush1.bf16.xpose.msra.mxu0 0
    %477 = vmatprep.subr.bf16.mxu0 0
    %478 = vmatpush1.bf16.xpose.msra.mxu0 0
    %479 = vmatprep.subr.bf16.mxu0 0
    %480 = vmatpush1.bf16.xpose.msra.mxu0 0
    %481 = vmatprep.subr.bf16.mxu0 0
    %482 = vmatpush1.bf16.xpose.msra.mxu0 0
    %483 = vmatprep.subr.bf16.mxu0 0
    %484 = vmatpush1.bf16.xpose.msra.mxu0 0
    %485 = vmatprep.subr.bf16.mxu0 0
    %486 = vmatpush1.bf16.xpose.msra.mxu0 0
    %487 = vmatprep.subr.bf16.mxu0 0
    %488 = vmatpush1.bf16.xpose.msra.mxu0 0
    %489 = vmatprep.subr.bf16.mxu0 0
    %490 = vmatpush1.bf16.xpose.msra.mxu0 0
    %491 = vmatprep.subr.bf16.mxu0 0
    %492 = vmatpush1.bf16.xpose.msra.mxu0 0
    %493 = vmatprep.subr.bf16.mxu0 0
    %494 = vmatpush1.bf16.xpose.msra.mxu0 0
    %495 = vmatprep.subr.bf16.mxu0 0
    %496 = vmatpush1.bf16.xpose.msra.mxu0 0
    %497 = vmatprep.subr.bf16.mxu0 0
    %498 = vmatpush1.bf16.xpose.msra.mxu0 0
    %499 = vmatprep.subr.bf16.mxu0 0
    %500 = vmatpush1.bf16.xpose.msra.mxu0 0
    %501 = vmatprep.subr.bf16.mxu0 0
    %502 = vmatpush1.bf16.xpose.msra.mxu0 0
    %503 = vmatprep.mubr.bf16.mxu0 0
    %504 = vmatmul.mubr.bf16.gmra.mrb[0].mxu0 %v466
    %v505 = vpop.f32.mrb[0].mxu0
    %v506 = vadd.f32 0.0, %v505
    %v507 = vpop.f32.mrb[0].mxu0
    %v508 = vpop.f32.mrb[0].mxu0
    %v509 = vpop.f32.mrb[0].mxu0
    %510 = vdwg.mxu0
    %512 = vrot.lane.b32.xlu0 %v166, 96
    %v513 = vpop.permute.xlu0 %512
    %v515 = vsel %vm170, %v166, 0
    %v518 = vsel %vm170, %v513, 0
    %520 = vmatprep.subr.bf16.mxu0 0
    %521 = vmatpush1.bf16.xpose.msra.mxu0 %v518
    %522 = vmatprep.subr.bf16.mxu0 0
    %523 = vmatpush1.bf16.xpose.msra.mxu0 0
    %524 = vmatprep.subr.bf16.mxu0 0
    %525 = vmatpush1.bf16.xpose.msra.mxu0 0
    %526 = vmatprep.subr.bf16.mxu0 0
    %527 = vmatpush1.bf16.xpose.msra.mxu0 0
    %528 = vmatprep.subr.bf16.mxu0 0
    %529 = vmatpush1.bf16.xpose.msra.mxu0 0
    %530 = vmatprep.subr.bf16.mxu0 0
    %531 = vmatpush1.bf16.xpose.msra.mxu0 0
    %532 = vmatprep.subr.bf16.mxu0 0
    %533 = vmatpush1.bf16.xpose.msra.mxu0 0
    %534 = vmatprep.subr.bf16.mxu0 0
    %535 = vmatpush1.bf16.xpose.msra.mxu0 0
    %536 = vmatprep.subr.bf16.mxu0 0
    %537 = vmatpush1.bf16.xpose.msra.mxu0 0
    %538 = vmatprep.subr.bf16.mxu0 0
    %539 = vmatpush1.bf16.xpose.msra.mxu0 0
    %540 = vmatprep.subr.bf16.mxu0 0
    %541 = vmatpush1.bf16.xpose.msra.mxu0 0
    %542 = vmatprep.subr.bf16.mxu0 0
    %543 = vmatpush1.bf16.xpose.msra.mxu0 0
    %544 = vmatprep.subr.bf16.mxu0 0
    %545 = vmatpush1.bf16.xpose.msra.mxu0 0
    %546 = vmatprep.subr.bf16.mxu0 0
    %547 = vmatpush1.bf16.xpose.msra.mxu0 0
    %548 = vmatprep.subr.bf16.mxu0 0
    %549 = vmatpush1.bf16.xpose.msra.mxu0 0
    %550 = vmatprep.subr.bf16.mxu0 0
    %551 = vmatpush1.bf16.xpose.msra.mxu0 0
    %552 = vmatprep.mubr.bf16.mxu0 0
    %553 = vmatmul.mubr.bf16.gmra.mrb[0].mxu0 %v515
    %v554 = vpop.f32.mrb[0].mxu0
    %v555 = vadd.f32 0.0, %v554
    %v556 = vpop.f32.mrb[0].mxu0
    %v557 = vpop.f32.mrb[0].mxu0
    %v558 = vpop.f32.mrb[0].mxu0
    %559 = vdwg.mxu0
    %v560 = vmul.f32 %v212, 0.35355338
    %v561 = vmul.f32 %v261, 0.35355338
    %v562 = vmul.f32 %v310, 0.35355338
    %v563 = vmul.f32 %v359, 0.35355338
    %v564 = vmul.f32 %v408, 0.35355338
    %v565 = vmul.f32 %v457, 0.35355338
    %v566 = vmul.f32 %v506, 0.35355338
    %v567 = vmul.f32 %v555, 0.35355338
    %v568 = vsel %vm170, %v560, -inf
    %569 = vmax.xlane.f32.xlu0 %v568
    %v570 = vpop.xlane.xlu0 %569
    %v571 = vsel %vm170, %v561, -inf
    %572 = vmax.xlane.f32.xlu0 %v571
    %v573 = vpop.xlane.xlu0 %572
    %v574 = vsel %vm170, %v562, -inf
    %575 = vmax.xlane.f32.xlu0 %v574
    %v576 = vpop.xlane.xlu0 %575
    %v577 = vsel %vm170, %v563, -inf
    %578 = vmax.xlane.f32.xlu0 %v577
    %v579 = vpop.xlane.xlu0 %578
    %v580 = vsel %vm170, %v564, -inf
    %581 = vmax.xlane.f32.xlu0 %v580
    %v582 = vpop.xlane.xlu0 %581
    %v583 = vsel %vm170, %v565, -inf
    %584 = vmax.xlane.f32.xlu0 %v583
    %v585 = vpop.xlane.xlu0 %584
    %v586 = vsel %vm170, %v566, -inf
    %587 = vmax.xlane.f32.xlu0 %v586
    %v588 = vpop.xlane.xlu0 %587
    %v589 = vsel %vm170, %v567, -inf
    %590 = vmax.xlane.f32.xlu0 %v589
    %v591 = vpop.xlane.xlu0 %590
    %v592 = vsub.f32 %v560, %v570
    %v593 = vsub.f32 %v561, %v573
    %v594 = vsub.f32 %v562, %v576
    %v595 = vsub.f32 %v563, %v579
    %v596 = vsub.f32 %v564, %v582
    %v597 = vsub.f32 %v565, %v585
    %v598 = vsub.f32 %v566, %v588
    %v599 = vsub.f32 %v567, %v591
    %v600 = vmul.f32 %v592, 1.442695
    %v601 = vpow.pop %v600
    %v602 = vmul.f32 %v593, 1.442695
    %v603 = vpow.pop %v602
    %v604 = vmul.f32 %v594, 1.442695
    %v605 = vpow.pop %v604
    %v606 = vmul.f32 %v595, 1.442695
    %v607 = vpow.pop %v606
    %v608 = vmul.f32 %v596, 1.442695
    %v609 = vpow.pop %v608
    %v610 = vmul.f32 %v597, 1.442695
    %v611 = vpow.pop %v610
    %v612 = vmul.f32 %v598, 1.442695
    %v613 = vpow.pop %v612
    %v614 = vmul.f32 %v599, 1.442695
    %v615 = vpow.pop %v614
    %v616 = vsel %vm170, %v601, 0.0
    %617 = vadd.xlane.f32.xlu0 %v616
    %v618 = vpop.xlane.xlu0 %617
    %v619 = vsel %vm170, %v603, 0.0
    %620 = vadd.xlane.f32.xlu0 %v619
    %v621 = vpop.xlane.xlu0 %620
    %v622 = vsel %vm170, %v605, 0.0
    %623 = vadd.xlane.f32.xlu0 %v622
    %v624 = vpop.xlane.xlu0 %623
    %v625 = vsel %vm170, %v607, 0.0
    %626 = vadd.xlane.f32.xlu0 %v625
    %v627 = vpop.xlane.xlu0 %626
    %v628 = vsel %vm170, %v609, 0.0
    %629 = vadd.xlane.f32.xlu0 %v628
    %v630 = vpop.xlane.xlu0 %629
    %v631 = vsel %vm170, %v611, 0.0
    %632 = vadd.xlane.f32.xlu0 %v631
    %v633 = vpop.xlane.xlu0 %632
    %v634 = vsel %vm170, %v613, 0.0
    %635 = vadd.xlane.f32.xlu0 %v634
    %v636 = vpop.xlane.xlu0 %635
    %v637 = vsel %vm170, %v615, 0.0
    %638 = vadd.xlane.f32.xlu0 %v637
    %v639 = vpop.xlane.xlu0 %638
    %v640 = vrcp.pop %v618
    %v641 = vrcp.pop %v621
    %v642 = vrcp.pop %v624
    %v643 = vrcp.pop %v627
    %v644 = vrcp.pop %v630
    %v645 = vrcp.pop %v633
    %v646 = vrcp.pop %v636
    %v647 = vrcp.pop %v639
    %v648 = vmul.f32 %v601, %v640
    %v649 = vmul.f32 %v603, %v641
    %v650 = vmul.f32 %v605, %v642
    %v651 = vmul.f32 %v607, %v643
    %v652 = vmul.f32 %v609, %v644
    %v653 = vmul.f32 %v611, %v645
    %v654 = vmul.f32 %v613, %v646
    %v655 = vmul.f32 %v615, %v647
    %v656 = vpack.c.bf16 %v648, %v648
    %v657 = vpack.c.bf16 %v649, %v649
    %v658 = vpack.c.bf16 %v650, %v650
    %v659 = vpack.c.bf16 %v651, %v651
    %v660 = vpack.c.bf16 %v652, %v652
    %v661 = vpack.c.bf16 %v653, %v653
    %v662 = vpack.c.bf16 %v654, %v654
    %v663 = vpack.c.bf16 %v655, %v655
    %664 = vrot.lane.b32.xlu0 %v159, 64
    %v665 = vpop.permute.xlu0 %664
    %v667 = vsel %vm170, %v656, 0
    %vm669 = vcmask 1043456
    %v671 = vsel %vm669, %v665, 0
    %673 = vmatprep.subr.bf16.mxu0 0
    %674 = vmatpush1.bf16.msra.mxu0 %v671
    %675 = vmatprep.subr.bf16.mxu0 0
    %676 = vmatpush1.bf16.msra.mxu0 0
    %677 = vmatprep.subr.bf16.mxu0 0
    %678 = vmatpush1.bf16.msra.mxu0 0
    %679 = vmatprep.subr.bf16.mxu0 0
    %680 = vmatpush1.bf16.msra.mxu0 0
    %681 = vmatprep.subr.bf16.mxu0 0
    %682 = vmatpush1.bf16.msra.mxu0 0
    %683 = vmatprep.subr.bf16.mxu0 0
    %684 = vmatpush1.bf16.msra.mxu0 0
    %685 = vmatprep.subr.bf16.mxu0 0
    %686 = vmatpush1.bf16.msra.mxu0 0
    %687 = vmatprep.subr.bf16.mxu0 0
    %688 = vmatpush1.bf16.msra.mxu0 0
    %689 = vmatprep.subr.bf16.mxu0 0
    %690 = vmatpush1.bf16.msra.mxu0 0
    %691 = vmatprep.subr.bf16.mxu0 0
    %692 = vmatpush1.bf16.msra.mxu0 0
    %693 = vmatprep.subr.bf16.mxu0 0
    %694 = vmatpush1.bf16.msra.mxu0 0
    %695 = vmatprep.subr.bf16.mxu0 0
    %696 = vmatpush1.bf16.msra.mxu0 0
    %697 = vmatprep.subr.bf16.mxu0 0
    %698 = vmatpush1.bf16.msra.mxu0 0
    %699 = vmatprep.subr.bf16.mxu0 0
    %700 = vmatpush1.bf16.msra.mxu0 0
    %701 = vmatprep.subr.bf16.mxu0 0
    %702 = vmatpush1.bf16.msra.mxu0 0
    %703 = vmatprep.subr.bf16.mxu0 0
    %704 = vmatpush1.bf16.msra.mxu0 0
    %705 = vmatprep.mubr.bf16.mxu0 0
    %706 = vmatmul.mubr.bf16.gmra.mrb[0].mxu0 %v667
    %v707 = vpop.f32.mrb[0].mxu0
    %v708 = vadd.f32 0.0, %v707
    %v709 = vpop.f32.mrb[0].mxu0
    %v710 = vpop.f32.mrb[0].mxu0
    %v711 = vpop.f32.mrb[0].mxu0
    %712 = vdwg.mxu0
    %713 = vrot.lane.b32.xlu0 %v160, 64
    %v714 = vpop.permute.xlu0 %713
    %v716 = vsel %vm170, %v657, 0
    %v719 = vsel %vm669, %v714, 0
    %721 = vmatprep.subr.bf16.mxu0 0
    %722 = vmatpush1.bf16.msra.mxu0 %v719
    %723 = vmatprep.subr.bf16.mxu0 0
    %724 = vmatpush1.bf16.msra.mxu0 0
    %725 = vmatprep.subr.bf16.mxu0 0
    %726 = vmatpush1.bf16.msra.mxu0 0
    %727 = vmatprep.subr.bf16.mxu0 0
    %728 = vmatpush1.bf16.msra.mxu0 0
    %729 = vmatprep.subr.bf16.mxu0 0
    %730 = vmatpush1.bf16.msra.mxu0 0
    %731 = vmatprep.subr.bf16.mxu0 0
    %732 = vmatpush1.bf16.msra.mxu0 0
    %733 = vmatprep.subr.bf16.mxu0 0
    %734 = vmatpush1.bf16.msra.mxu0 0
    %735 = vmatprep.subr.bf16.mxu0 0
    %736 = vmatpush1.bf16.msra.mxu0 0
    %737 = vmatprep.subr.bf16.mxu0 0
    %738 = vmatpush1.bf16.msra.mxu0 0
    %739 = vmatprep.subr.bf16.mxu0 0
    %740 = vmatpush1.bf16.msra.mxu0 0
    %741 = vmatprep.subr.bf16.mxu0 0
    %742 = vmatpush1.bf16.msra.mxu0 0
    %743 = vmatprep.subr.bf16.mxu0 0
    %744 = vmatpush1.bf16.msra.mxu0 0
    %745 = vmatprep.subr.bf16.mxu0 0
    %746 = vmatpush1.bf16.msra.mxu0 0
    %747 = vmatprep.subr.bf16.mxu0 0
    %748 = vmatpush1.bf16.msra.mxu0 0
    %749 = vmatprep.subr.bf16.mxu0 0
    %750 = vmatpush1.bf16.msra.mxu0 0
    %751 = vmatprep.subr.bf16.mxu0 0
    %752 = vmatpush1.bf16.msra.mxu0 0
    %753 = vmatprep.mubr.bf16.mxu0 0
    %754 = vmatmul.mubr.bf16.gmra.mrb[0].mxu0 %v716
    %v755 = vpop.f32.mrb[0].mxu0
    %v756 = vadd.f32 0.0, %v755
    %v757 = vpop.f32.mrb[0].mxu0
    %v758 = vpop.f32.mrb[0].mxu0
    %v759 = vpop.f32.mrb[0].mxu0
    %760 = vdwg.mxu0
    %761 = vrot.lane.b32.xlu0 %v161, 64
    %v762 = vpop.permute.xlu0 %761
    %v764 = vsel %vm170, %v658, 0
    %v767 = vsel %vm669, %v762, 0
    %769 = vmatprep.subr.bf16.mxu0 0
    %770 = vmatpush1.bf16.msra.mxu0 %v767
    %771 = vmatprep.subr.bf16.mxu0 0
    %772 = vmatpush1.bf16.msra.mxu0 0
    %773 = vmatprep.subr.bf16.mxu0 0
    %774 = vmatpush1.bf16.msra.mxu0 0
    %775 = vmatprep.subr.bf16.mxu0 0
    %776 = vmatpush1.bf16.msra.mxu0 0
    %777 = vmatprep.subr.bf16.mxu0 0
    %778 = vmatpush1.bf16.msra.mxu0 0
    %779 = vmatprep.subr.bf16.mxu0 0
    %780 = vmatpush1.bf16.msra.mxu0 0
    %781 = vmatprep.subr.bf16.mxu0 0
    %782 = vmatpush1.bf16.msra.mxu0 0
    %783 = vmatprep.subr.bf16.mxu0 0
    %784 = vmatpush1.bf16.msra.mxu0 0
    %785 = vmatprep.subr.bf16.mxu0 0
    %786 = vmatpush1.bf16.msra.mxu0 0
    %787 = vmatprep.subr.bf16.mxu0 0
    %788 = vmatpush1.bf16.msra.mxu0 0
    %789 = vmatprep.subr.bf16.mxu0 0
    %790 = vmatpush1.bf16.msra.mxu0 0
    %791 = vmatprep.subr.bf16.mxu0 0
    %792 = vmatpush1.bf16.msra.mxu0 0
    %793 = vmatprep.subr.bf16.mxu0 0
    %794 = vmatpush1.bf16.msra.mxu0 0
    %795 = vmatprep.subr.bf16.mxu0 0
    %796 = vmatpush1.bf16.msra.mxu0 0
    %797 = vmatprep.subr.bf16.mxu0 0
    %798 = vmatpush1.bf16.msra.mxu0 0
    %799 = vmatprep.subr.bf16.mxu0 0
    %800 = vmatpush1.bf16.msra.mxu0 0
    %801 = vmatprep.mubr.bf16.mxu0 0
    %802 = vmatmul.mubr.bf16.gmra.mrb[0].mxu0 %v764
    %v803 = vpop.f32.mrb[0].mxu0
    %v804 = vadd.f32 0.0, %v803
    %v805 = vpop.f32.mrb[0].mxu0
    %v806 = vpop.f32.mrb[0].mxu0
    %v807 = vpop.f32.mrb[0].mxu0
    %808 = vdwg.mxu0
    %809 = vrot.lane.b32.xlu0 %v162, 64
    %v810 = vpop.permute.xlu0 %809
    %v812 = vsel %vm170, %v659, 0
    %v815 = vsel %vm669, %v810, 0
    %817 = vmatprep.subr.bf16.mxu0 0
    %818 = vmatpush1.bf16.msra.mxu0 %v815
    %819 = vmatprep.subr.bf16.mxu0 0
    %820 = vmatpush1.bf16.msra.mxu0 0
    %821 = vmatprep.subr.bf16.mxu0 0
    %822 = vmatpush1.bf16.msra.mxu0 0
    %823 = vmatprep.subr.bf16.mxu0 0
    %824 = vmatpush1.bf16.msra.mxu0 0
    %825 = vmatprep.subr.bf16.mxu0 0
    %826 = vmatpush1.bf16.msra.mxu0 0
    %827 = vmatprep.subr.bf16.mxu0 0
    %828 = vmatpush1.bf16.msra.mxu0 0
    %829 = vmatprep.subr.bf16.mxu0 0
    %830 = vmatpush1.bf16.msra.mxu0 0
    %831 = vmatprep.subr.bf16.mxu0 0
    %832 = vmatpush1.bf16.msra.mxu0 0
    %833 = vmatprep.subr.bf16.mxu0 0
    %834 = vmatpush1.bf16.msra.mxu0 0
    %835 = vmatprep.subr.bf16.mxu0 0
    %836 = vmatpush1.bf16.msra.mxu0 0
    %837 = vmatprep.subr.bf16.mxu0 0
    %838 = vmatpush1.bf16.msra.mxu0 0
    %839 = vmatprep.subr.bf16.mxu0 0
    %840 = vmatpush1.bf16.msra.mxu0 0
    %841 = vmatprep.subr.bf16.mxu0 0
    %842 = vmatpush1.bf16.msra.mxu0 0
    %843 = vmatprep.subr.bf16.mxu0 0
    %844 = vmatpush1.bf16.msra.mxu0 0
    %845 = vmatprep.subr.bf16.mxu0 0
    %846 = vmatpush1.bf16.msra.mxu0 0
    %847 = vmatprep.subr.bf16.mxu0 0
    %848 = vmatpush1.bf16.msra.mxu0 0
    %849 = vmatprep.mubr.bf16.mxu0 0
    %850 = vmatmul.mubr.bf16.gmra.mrb[0].mxu0 %v812
    %v851 = vpop.f32.mrb[0].mxu0
    %v852 = vadd.f32 0.0, %v851
    %v853 = vpop.f32.mrb[0].mxu0
    %v854 = vpop.f32.mrb[0].mxu0
    %v855 = vpop.f32.mrb[0].mxu0
    %856 = vdwg.mxu0
    %857 = vrot.lane.b32.xlu0 %v163, 64
    %v858 = vpop.permute.xlu0 %857
    %v860 = vsel %vm170, %v660, 0
    %v863 = vsel %vm669, %v858, 0
    %865 = vmatprep.subr.bf16.mxu0 0
    %866 = vmatpush1.bf16.msra.mxu0 %v863
    %867 = vmatprep.subr.bf16.mxu0 0
    %868 = vmatpush1.bf16.msra.mxu0 0
    %869 = vmatprep.subr.bf16.mxu0 0
    %870 = vmatpush1.bf16.msra.mxu0 0
    %871 = vmatprep.subr.bf16.mxu0 0
    %872 = vmatpush1.bf16.msra.mxu0 0
    %873 = vmatprep.subr.bf16.mxu0 0
    %874 = vmatpush1.bf16.msra.mxu0 0
    %875 = vmatprep.subr.bf16.mxu0 0
    %876 = vmatpush1.bf16.msra.mxu0 0
    %877 = vmatprep.subr.bf16.mxu0 0
    %878 = vmatpush1.bf16.msra.mxu0 0
    %879 = vmatprep.subr.bf16.mxu0 0
    %880 = vmatpush1.bf16.msra.mxu0 0
    %881 = vmatprep.subr.bf16.mxu0 0
    %882 = vmatpush1.bf16.msra.mxu0 0
    %883 = vmatprep.subr.bf16.mxu0 0
    %884 = vmatpush1.bf16.msra.mxu0 0
    %885 = vmatprep.subr.bf16.mxu0 0
    %886 = vmatpush1.bf16.msra.mxu0 0
    %887 = vmatprep.subr.bf16.mxu0 0
    %888 = vmatpush1.bf16.msra.mxu0 0
    %889 = vmatprep.subr.bf16.mxu0 0
    %890 = vmatpush1.bf16.msra.mxu0 0
    %891 = vmatprep.subr.bf16.mxu0 0
    %892 = vmatpush1.bf16.msra.mxu0 0
    %893 = vmatprep.subr.bf16.mxu0 0
    %894 = vmatpush1.bf16.msra.mxu0 0
    %895 = vmatprep.subr.bf16.mxu0 0
    %896 = vmatpush1.bf16.msra.mxu0 0
    %897 = vmatprep.mubr.bf16.mxu0 0
    %898 = vmatmul.mubr.bf16.gmra.mrb[0].mxu0 %v860
    %v899 = vpop.f32.mrb[0].mxu0
    %v900 = vadd.f32 0.0, %v899
    %v901 = vpop.f32.mrb[0].mxu0
    %v902 = vpop.f32.mrb[0].mxu0
    %v903 = vpop.f32.mrb[0].mxu0
    %904 = vdwg.mxu0
    %905 = vrot.lane.b32.xlu0 %v164, 64
    %v906 = vpop.permute.xlu0 %905
    %v908 = vsel %vm170, %v661, 0
    %v911 = vsel %vm669, %v906, 0
    %913 = vmatprep.subr.bf16.mxu0 0
    %914 = vmatpush1.bf16.msra.mxu0 %v911
    %915 = vmatprep.subr.bf16.mxu0 0
    %916 = vmatpush1.bf16.msra.mxu0 0
    %917 = vmatprep.subr.bf16.mxu0 0
    %918 = vmatpush1.bf16.msra.mxu0 0
    %919 = vmatprep.subr.bf16.mxu0 0
    %920 = vmatpush1.bf16.msra.mxu0 0
    %921 = vmatprep.subr.bf16.mxu0 0
    %922 = vmatpush1.bf16.msra.mxu0 0
    %923 = vmatprep.subr.bf16.mxu0 0
    %924 = vmatpush1.bf16.msra.mxu0 0
    %925 = vmatprep.subr.bf16.mxu0 0
    %926 = vmatpush1.bf16.msra.mxu0 0
    %927 = vmatprep.subr.bf16.mxu0 0
    %928 = vmatpush1.bf16.msra.mxu0 0
    %929 = vmatprep.subr.bf16.mxu0 0
    %930 = vmatpush1.bf16.msra.mxu0 0
    %931 = vmatprep.subr.bf16.mxu0 0
    %932 = vmatpush1.bf16.msra.mxu0 0
    %933 = vmatprep.subr.bf16.mxu0 0
    %934 = vmatpush1.bf16.msra.mxu0 0
    %935 = vmatprep.subr.bf16.mxu0 0
    %936 = vmatpush1.bf16.msra.mxu0 0
    %937 = vmatprep.subr.bf16.mxu0 0
    %938 = vmatpush1.bf16.msra.mxu0 0
    %939 = vmatprep.subr.bf16.mxu0 0
    %940 = vmatpush1.bf16.msra.mxu0 0
    %941 = vmatprep.subr.bf16.mxu0 0
    %942 = vmatpush1.bf16.msra.mxu0 0
    %943 = vmatprep.subr.bf16.mxu0 0
    %944 = vmatpush1.bf16.msra.mxu0 0
    %945 = vmatprep.mubr.bf16.mxu0 0
    %946 = vmatmul.mubr.bf16.gmra.mrb[0].mxu0 %v908
    %v947 = vpop.f32.mrb[0].mxu0
    %v948 = vadd.f32 0.0, %v947
    %v949 = vpop.f32.mrb[0].mxu0
    %v950 = vpop.f32.mrb[0].mxu0
    %v951 = vpop.f32.mrb[0].mxu0
    %952 = vdwg.mxu0
    %953 = vrot.lane.b32.xlu0 %v165, 64
    %v954 = vpop.permute.xlu0 %953
    %v956 = vsel %vm170, %v662, 0
    %v959 = vsel %vm669, %v954, 0
    %961 = vmatprep.subr.bf16.mxu0 0
    %962 = vmatpush1.bf16.msra.mxu0 %v959
    %963 = vmatprep.subr.bf16.mxu0 0
    %964 = vmatpush1.bf16.msra.mxu0 0
    %965 = vmatprep.subr.bf16.mxu0 0
    %966 = vmatpush1.bf16.msra.mxu0 0
    %967 = vmatprep.subr.bf16.mxu0 0
    %968 = vmatpush1.bf16.msra.mxu0 0
    %969 = vmatprep.subr.bf16.mxu0 0
    %970 = vmatpush1.bf16.msra.mxu0 0
    %971 = vmatprep.subr.bf16.mxu0 0
    %972 = vmatpush1.bf16.msra.mxu0 0
    %973 = vmatprep.subr.bf16.mxu0 0
    %974 = vmatpush1.bf16.msra.mxu0 0
    %975 = vmatprep.subr.bf16.mxu0 0
    %976 = vmatpush1.bf16.msra.mxu0 0
    %977 = vmatprep.subr.bf16.mxu0 0
    %978 = vmatpush1.bf16.msra.mxu0 0
    %979 = vmatprep.subr.bf16.mxu0 0
    %980 = vmatpush1.bf16.msra.mxu0 0
    %981 = vmatprep.subr.bf16.mxu0 0
    %982 = vmatpush1.bf16.msra.mxu0 0
    %983 = vmatprep.subr.bf16.mxu0 0
    %984 = vmatpush1.bf16.msra.mxu0 0
    %985 = vmatprep.subr.bf16.mxu0 0
    %986 = vmatpush1.bf16.msra.mxu0 0
    %987 = vmatprep.subr.bf16.mxu0 0
    %988 = vmatpush1.bf16.msra.mxu0 0
    %989 = vmatprep.subr.bf16.mxu0 0
    %990 = vmatpush1.bf16.msra.mxu0 0
    %991 = vmatprep.subr.bf16.mxu0 0
    %992 = vmatpush1.bf16.msra.mxu0 0
    %993 = vmatprep.mubr.bf16.mxu0 0
    %994 = vmatmul.mubr.bf16.gmra.mrb[0].mxu0 %v956
    %v995 = vpop.f32.mrb[0].mxu0
    %v996 = vadd.f32 0.0, %v995
    %v997 = vpop.f32.mrb[0].mxu0
    %v998 = vpop.f32.mrb[0].mxu0
    %v999 = vpop.f32.mrb[0].mxu0
    %1000 = vdwg.mxu0
    %1001 = vrot.lane.b32.xlu0 %v166, 64
    %v1002 = vpop.permute.xlu0 %1001
    %v1004 = vsel %vm170, %v663, 0
    %v1007 = vsel %vm669, %v1002, 0
    %1009 = vmatprep.subr.bf16.mxu0 0
    %1010 = vmatpush1.bf16.msra.mxu0 %v1007
    %1011 = vmatprep.subr.bf16.mxu0 0
    %1012 = vmatpush1.bf16.msra.mxu0 0
    %1013 = vmatprep.subr.bf16.mxu0 0
    %1014 = vmatpush1.bf16.msra.mxu0 0
    %1015 = vmatprep.subr.bf16.mxu0 0
    %1016 = vmatpush1.bf16.msra.mxu0 0
    %1017 = vmatprep.subr.bf16.mxu0 0
    %1018 = vmatpush1.bf16.msra.mxu0 0
    %1019 = vmatprep.subr.bf16.mxu0 0
    %1020 = vmatpush1.bf16.msra.mxu0 0
    %1021 = vmatprep.subr.bf16.mxu0 0
    %1022 = vmatpush1.bf16.msra.mxu0 0
    %1023 = vmatprep.subr.bf16.mxu0 0
    %1024 = vmatpush1.bf16.msra.mxu0 0
    %1025 = vmatprep.subr.bf16.mxu0 0
    %1026 = vmatpush1.bf16.msra.mxu0 0
    %1027 = vmatprep.subr.bf16.mxu0 0
    %1028 = vmatpush1.bf16.msra.mxu0 0
    %1029 = vmatprep.subr.bf16.mxu0 0
    %1030 = vmatpush1.bf16.msra.mxu0 0
    %1031 = vmatprep.subr.bf16.mxu0 0
    %1032 = vmatpush1.bf16.msra.mxu0 0
    %1033 = vmatprep.subr.bf16.mxu0 0
    %1034 = vmatpush1.bf16.msra.mxu0 0
    %1035 = vmatprep.subr.bf16.mxu0 0
    %1036 = vmatpush1.bf16.msra.mxu0 0
    %1037 = vmatprep.subr.bf16.mxu0 0
    %1038 = vmatpush1.bf16.msra.mxu0 0
    %1039 = vmatprep.subr.bf16.mxu0 0
    %1040 = vmatpush1.bf16.msra.mxu0 0
    %1041 = vmatprep.mubr.bf16.mxu0 0
    %1042 = vmatmul.mubr.bf16.gmra.mrb[0].mxu0 %v1004
    %v1043 = vpop.f32.mrb[0].mxu0
    %v1044 = vadd.f32 0.0, %v1043
    %v1045 = vpop.f32.mrb[0].mxu0
    %v1046 = vpop.f32.mrb[0].mxu0
    %v1047 = vpop.f32.mrb[0].mxu0
    %1048 = vdwg.mxu0
    %1050 = vrot.lane.b32.xlu0 %v756, 8
    %v1051 = vpop.permute.xlu0 %1050
    %1054 = vrot.lane.b32.xlu0 %v804, 16
    %v1055 = vpop.permute.xlu0 %1054
    %1058 = vrot.lane.b32.xlu0 %v852, 24
    %v1059 = vpop.permute.xlu0 %1058
    %v1061 = vsel %vm170, %v708, %v1051
    %vm1062 = vcmask 130048
    %v1063 = vsel %vm1062, %v1061, %v1055
    %vm1064 = vcmask 195584
    %v1065 = vsel %vm1064, %v1063, %v1059
    %1067 = vrot.lane.b32.xlu0 %v948, 8
    %v1068 = vpop.permute.xlu0 %1067
    %1071 = vrot.lane.b32.xlu0 %v996, 16
    %v1072 = vpop.permute.xlu0 %1071
    %1075 = vrot.lane.b32.xlu0 %v1044, 24
    %v1076 = vpop.permute.xlu0 %1075
    %v1078 = vsel %vm170, %v900, %v1068
    %v1079 = vsel %vm1062, %v1078, %v1072
    %v1080 = vsel %vm1064, %v1079, %v1076
    %v1081 = vpack.c.bf16 %v1080, %v1065
    %v1082 = vlaneseq
    %v1083 = vshrl.u32 %v1082, 7
    %v1084 = vsub.s32 1, %v1083
    %v1085 = vrot.slane %v69, %v1084
    %v1086 = vunpack.c.h.b16 %v57
    %v1087 = vunpack.c.h.b16 %v60
    %v1088 = vunpack.c.h.b16 %v63
    %v1089 = vunpack.c.h.b16 %v66
    %v1090 = vpack.c.b16 %v1087, %v1086
    %v1091 = vpack.c.b16 %v1089, %v1088
    %v1095 = vsel %vm94, %v1081, 0
    %1097 = vmatprep.subr.bf16.mxu0 0
    %1098 = vmatpush1.bf16.msra.mxu0 %v1090
    %1099 = vmatprep.subr.bf16.mxu0 0
    %1100 = vmatpush1.bf16.msra.mxu0 %v1091
    %1101 = vmatprep.subr.bf16.mxu0 0
    %1102 = vmatpush1.bf16.msra.mxu0 0
    %1103 = vmatprep.subr.bf16.mxu0 0
    %1104 = vmatpush1.bf16.msra.mxu0 0
    %1105 = vmatprep.subr.bf16.mxu0 0
    %1106 = vmatpush1.bf16.msra.mxu0 0
    %1107 = vmatprep.subr.bf16.mxu0 0
    %1108 = vmatpush1.bf16.msra.mxu0 0
    %1109 = vmatprep.subr.bf16.mxu0 0
    %1110 = vmatpush1.bf16.msra.mxu0 0
    %1111 = vmatprep.subr.bf16.mxu0 0
    %1112 = vmatpush1.bf16.msra.mxu0 0
    %1113 = vmatprep.subr.bf16.mxu0 0
    %1114 = vmatpush1.bf16.msra.mxu0 0
    %1115 = vmatprep.subr.bf16.mxu0 0
    %1116 = vmatpush1.bf16.msra.mxu0 0
    %1117 = vmatprep.subr.bf16.mxu0 0
    %1118 = vmatpush1.bf16.msra.mxu0 0
    %1119 = vmatprep.subr.bf16.mxu0 0
    %1120 = vmatpush1.bf16.msra.mxu0 0
    %1121 = vmatprep.subr.bf16.mxu0 0
    %1122 = vmatpush1.bf16.msra.mxu0 0
    %1123 = vmatprep.subr.bf16.mxu0 0
    %1124 = vmatpush1.bf16.msra.mxu0 0
    %1125 = vmatprep.subr.bf16.mxu0 0
    %1126 = vmatpush1.bf16.msra.mxu0 0
    %1127 = vmatprep.subr.bf16.mxu0 0
    %1128 = vmatpush1.bf16.msra.mxu0 0
    %1129 = vmatprep.mubr.bf16.mxu0 0
    %1130 = vmatmul.mubr.bf16.gmra.mrb[0].mxu0 %v1095
    %v1131 = vpop.f32.mrb[0].mxu0
    %v1132 = vadd.f32 %v1085, %v1131
    %v1133 = vpop.f32.mrb[0].mxu0
    %v1134 = vpop.f32.mrb[0].mxu0
    %v1135 = vadd.f32 %v1085, %v1134
    %v1136 = vpop.f32.mrb[0].mxu0
    %1137 = vdwg.mxu0
    %v1138 = vadd.f32 %v75, %v1132
    %v1139 = vadd.f32 %v76, %v1135
    %v1140 = vsel %vm94, %v1138, 0.0
    %1141 = vadd.xlane.f32.xlu0 %v1140
    %v1142 = vpop.xlane.xlu0 %1141
    %v1143 = vsel %vm94, %v1139, 0.0
    %1144 = vadd.xlane.f32.xlu0 %v1143
    %v1145 = vpop.xlane.xlu0 %1144
    %v1146 = vrcp.pop 32.0
    %v1147 = vmul.f32 %v1142, %v1146
    %v1148 = vmul.f32 %v1145, %v1146
    %v1149 = vsub.f32 %v1138, %v1147
    %v1150 = vsub.f32 %v1139, %v1148
    %v1151 = vmul.f32 %v1149, %v1149
    %v1152 = vmul.f32 %v1150, %v1150
    %v1153 = vsel %vm94, %v1151, 0.0
    %1154 = vadd.xlane.f32.xlu0 %v1153
    %v1155 = vpop.xlane.xlu0 %1154
    %v1156 = vsel %vm94, %v1152, 0.0
    %1157 = vadd.xlane.f32.xlu0 %v1156
    %v1158 = vpop.xlane.xlu0 %1157
    %v1159 = vmul.f32 %v1155, %v1146
    %v1160 = vmul.f32 %v1158, %v1146
    %v1161 = vadd.f32 %v1159, 1e-06
    %v1162 = vadd.f32 %v1160, 1e-06
    %v1163 = vrsqrt.pop %v1161
    %v1164 = vrsqrt.pop %v1162
    %v1165 = vmul.f32 %v1149, %v1163
    %v1166 = vmul.f32 %v1150, %v1164
    %v1167 = vlaneseq
    %v1168 = vshrl.u32 %v1167, 7
    %v1169 = vsub.s32 2, %v1168
    %v1170 = vrot.slane %v69, %v1169
    %v1171 = vmul.f32 %v1165, %v1170
    %v1172 = vmul.f32 %v1166, %v1170
    %v1173 = vlaneseq
    %v1174 = vshrl.u32 %v1173, 7
    %v1175 = vsub.s32 3, %v1174
    %v1176 = vrot.slane %v69, %v1175
    %v1177 = vadd.f32 %v1171, %v1176
    %v1178 = vadd.f32 %v1172, %v1176
    %v1179 = vpack.c.bf16 %v1178, %v1177
    %v1180 = vlaneseq
    %v1181 = vshrl.u32 %v1180, 7
    %v1182 = vsub.s32 4, %v1181
    %v1183 = vrot.slane %v69, %v1182
    %v1188 = vunpack.c.l.b16 %v58
    %v1189 = vunpack.c.l.b16 %v61
    %v1190 = vunpack.c.l.b16 %v64
    %v1191 = vunpack.c.l.b16 %v67
    %v1192 = vpack.c.b16 %v1189, %v1188
    %v1193 = vpack.c.b16 %v1191, %v1190
    %v1197 = vsel %vm94, %v1179, 0
    %1199 = vmatprep.subr.bf16.mxu0 0
    %1200 = vmatpush1.bf16.msra.mxu0 %v1192
    %1201 = vmatprep.subr.bf16.mxu0 0
    %1202 = vmatpush1.bf16.msra.mxu0 %v1193
    %1203 = vmatprep.subr.bf16.mxu0 0
    %1204 = vmatpush1.bf16.msra.mxu0 0
    %1205 = vmatprep.subr.bf16.mxu0 0
    %1206 = vmatpush1.bf16.msra.mxu0 0
    %1207 = vmatprep.subr.bf16.mxu0 0
    %1208 = vmatpush1.bf16.msra.mxu0 0
    %1209 = vmatprep.subr.bf16.mxu0 0
    %1210 = vmatpush1.bf16.msra.mxu0 0
    %1211 = vmatprep.subr.bf16.mxu0 0
    %1212 = vmatpush1.bf16.msra.mxu0 0
    %1213 = vmatprep.subr.bf16.mxu0 0
    %1214 = vmatpush1.bf16.msra.mxu0 0
    %1215 = vmatprep.subr.bf16.mxu0 0
    %1216 = vmatpush1.bf16.msra.mxu0 0
    %1217 = vmatprep.subr.bf16.mxu0 0
    %1218 = vmatpush1.bf16.msra.mxu0 0
    %1219 = vmatprep.subr.bf16.mxu0 0
    %1220 = vmatpush1.bf16.msra.mxu0 0
    %1221 = vmatprep.subr.bf16.mxu0 0
    %1222 = vmatpush1.bf16.msra.mxu0 0
    %1223 = vmatprep.subr.bf16.mxu0 0
    %1224 = vmatpush1.bf16.msra.mxu0 0
    %1225 = vmatprep.subr.bf16.mxu0 0
    %1226 = vmatpush1.bf16.msra.mxu0 0
    %1227 = vmatprep.subr.bf16.mxu0 0
    %1228 = vmatpush1.bf16.msra.mxu0 0
    %1229 = vmatprep.subr.bf16.mxu0 0
    %1230 = vmatpush1.bf16.msra.mxu0 0
    %1231 = vmatprep.mubr.bf16.mxu0 0
    %1232 = vmatmul.mubr.bf16.gmra.mrb[0].mxu0 %v1197
    %v1233 = vpop.f32.mrb[0].mxu0
    %v1234 = vadd.f32 %v1183, %v1233
    %v1235 = vpop.f32.mrb[0].mxu0
    %v1236 = vpop.f32.mrb[0].mxu0
    %v1237 = vadd.f32 %v1183, %v1236
    %v1238 = vpop.f32.mrb[0].mxu0
    %1239 = vdwg.mxu0
    %v1240 = vmax.f32 %v1234, 0.0
    %v1241 = vmax.f32 %v1237, 0.0
    %v1242 = vpack.c.bf16 %v1241, %v1240
    %v1243 = vlaneseq
    %v1244 = vshrl.u32 %v1243, 7
    %v1245 = vsub.s32 5, %v1244
    %v1246 = vrot.slane %v69, %v1245
    %v1247 = vunpack.c.h.b16 %v58
    %v1248 = vunpack.c.h.b16 %v61
    %v1249 = vunpack.c.h.b16 %v64
    %v1250 = vunpack.c.h.b16 %v67
    %v1251 = vpack.c.b16 %v1248, %v1247
    %v1252 = vpack.c.b16 %v1250, %v1249
    %vm1253 = vcmask 523264
    %v1255 = vsel %vm1253, %v1242, 0
    %v1258 = vsel %vm1253, %v1251, 0
    %v1261 = vsel %vm1253, %v1252, 0
    %1263 = vmatprep.subr.bf16.mxu0 0
    %1264 = vmatpush1.bf16.xpose.msra.mxu0 %v1258
    %1265 = vmatprep.subr.bf16.mxu0 0
    %1266 = vmatpush1.bf16.xpose.msra.mxu0 %v1261
    %1267 = vmatprep.subr.bf16.mxu0 0
    %1268 = vmatpush1.bf16.xpose.msra.mxu0 0
    %1269 = vmatprep.subr.bf16.mxu0 0
    %1270 = vmatpush1.bf16.xpose.msra.mxu0 0
    %1271 = vmatprep.subr.bf16.mxu0 0
    %1272 = vmatpush1.bf16.xpose.msra.mxu0 0
    %1273 = vmatprep.subr.bf16.mxu0 0
    %1274 = vmatpush1.bf16.xpose.msra.mxu0 0
    %1275 = vmatprep.subr.bf16.mxu0 0
    %1276 = vmatpush1.bf16.xpose.msra.mxu0 0
    %1277 = vmatprep.subr.bf16.mxu0 0
    %1278 = vmatpush1.bf16.xpose.msra.mxu0 0
    %1279 = vmatprep.subr.bf16.mxu0 0
    %1280 = vmatpush1.bf16.xpose.msra.mxu0 0
    %1281 = vmatprep.subr.bf16.mxu0 0
    %1282 = vmatpush1.bf16.xpose.msra.mxu0 0
    %1283 = vmatprep.subr.bf16.mxu0 0
    %1284 = vmatpush1.bf16.xpose.msra.mxu0 0
    %1285 = vmatprep.subr.bf16.mxu0 0
    %1286 = vmatpush1.bf16.xpose.msra.mxu0 0
    %1287 = vmatprep.subr.bf16.mxu0 0
    %1288 = vmatpush1.bf16.xpose.msra.mxu0 0
    %1289 = vmatprep.subr.bf16.mxu0 0
    %1290 = vmatpush1.bf16.xpose.msra.mxu0 0
    %1291 = vmatprep.subr.bf16.mxu0 0
    %1292 = vmatpush1.bf16.xpose.msra.mxu0 0
    %1293 = vmatprep.subr.bf16.mxu0 0
    %1294 = vmatpush1.bf16.xpose.msra.mxu0 0
    %1295 = vmatprep.mubr.bf16.mxu0 0
    %1296 = vmatmul.mubr.bf16.gmra.mrb[0].mxu0 %v1255
    %v1297 = vpop.f32.mrb[0].mxu0
    %v1298 = vadd.f32 %v1246, %v1297
    %v1299 = vpop.f32.mrb[0].mxu0
    %v1300 = vpop.f32.mrb[0].mxu0
    %v1301 = vadd.f32 %v1246, %v1300
    %v1302 = vpop.f32.mrb[0].mxu0
    %1303 = vdwg.mxu0
    %v1304 = vadd.f32 %v1177, %v1298
    %v1305 = vadd.f32 %v1178, %v1301
    %v1306 = vsel %vm94, %v1304, 0.0
    %1307 = vadd.xlane.f32.xlu0 %v1306
    %v1308 = vpop.xlane.xlu0 %1307
    %v1309 = vsel %vm94, %v1305, 0.0
    %1310 = vadd.xlane.f32.xlu0 %v1309
    %v1311 = vpop.xlane.xlu0 %1310
    %v1312 = vmul.f32 %v1308, %v1146
    %v1313 = vmul.f32 %v1311, %v1146
    %v1314 = vsub.f32 %v1304, %v1312
    %v1315 = vsub.f32 %v1305, %v1313
    %v1316 = vmul.f32 %v1314, %v1314
    %v1317 = vmul.f32 %v1315, %v1315
    %v1318 = vsel %vm94, %v1316, 0.0
    %1319 = vadd.xlane.f32.xlu0 %v1318
    %v1320 = vpop.xlane.xlu0 %1319
    %v1321 = vsel %vm94, %v1317, 0.0
    %1322 = vadd.xlane.f32.xlu0 %v1321
    %v1323 = vpop.xlane.xlu0 %1322
    %v1324 = vmul.f32 %v1320, %v1146
    %v1325 = vmul.f32 %v1323, %v1146
    %v1326 = vadd.f32 %v1324, 1e-06
    %v1327 = vadd.f32 %v1325, 1e-06
    %v1328 = vrsqrt.pop %v1326
    %v1329 = vrsqrt.pop %v1327
    %v1330 = vmul.f32 %v1314, %v1328
    %v1331 = vmul.f32 %v1315, %v1329
    %v1332 = vlaneseq
    %v1333 = vshrl.u32 %v1332, 7
    %v1334 = vsub.s32 6, %v1333
    %v1335 = vrot.slane %v69, %v1334
    %v1336 = vmul.f32 %v1330, %v1335
    %v1337 = vmul.f32 %v1331, %v1335
    %v1338 = vlaneseq
    %v1339 = vshrl.u32 %v1338, 7
    %v1340 = vsub.s32 7, %v1339
    %v1341 = vrot.slane %v69, %v1340
    %v1342 = vadd.f32 %v1336, %v1341
    %v1343 = vadd.f32 %v1337, %v1341
    %v1344 = vsel %vm94, %v1342, 0.0
    %v1345 = vrot.slane %v1344, 4
    %v1346 = vadd.f32 %v1344, %v1345
    %v1347 = vrot.slane %v1346, 2
    %v1348 = vadd.f32 %v1346, %v1347
    %v1349 = vrot.slane %v1348, 1
    %v1350 = vadd.f32 %v1348, %v1349
    %v1351 = vrcp.pop 8.0
    %v1352 = vmul.f32 %v1350, %v1351
    %v1353 = vsel %vm94, %v1343, 0.0
    %v1354 = vrot.slane %v1353, 4
    %v1355 = vadd.f32 %v1353, %v1354
    %v1356 = vrot.slane %v1355, 2
    %v1357 = vadd.f32 %v1355, %v1356
    %v1358 = vrot.slane %v1357, 1
    %v1359 = vadd.f32 %v1357, %v1358
    %v1360 = vmul.f32 %v1359, %v1351
    %vm1361 = vcmask 1040384
    %v1362 = vsel %vm1361, %v1352, %v1360
    %v1363 = vpack.c.bf16 %v1362, %v1362
    %v1364 = vlaneseq
    %v1365 = vshrl.u32 %v1364, 7
    %v1366 = vsub.s32 0, %v1365
    %v1367 = vrot.slane %v70, %v1366
    %v1372 = vunpack.c.l.b16 %v59
    %v1373 = vunpack.c.l.b16 %v62
    %v1374 = vunpack.c.l.b16 %v65
    %v1375 = vunpack.c.l.b16 %v68
    %v1376 = vpack.c.b16 %v1373, %v1372
    %v1377 = vpack.c.b16 %v1375, %v1374
    %v1381 = vsel %vm94, %v1363, 0
    %1383 = vmatprep.subr.bf16.mxu0 0
    %1384 = vmatpush1.bf16.msra.mxu0 %v1376
    %1385 = vmatprep.subr.bf16.mxu0 0
    %1386 = vmatpush1.bf16.msra.mxu0 %v1377
    %1387 = vmatprep.subr.bf16.mxu0 0
    %1388 = vmatpush1.bf16.msra.mxu0 0
    %1389 = vmatprep.subr.bf16.mxu0 0
    %1390 = vmatpush1.bf16.msra.mxu0 0
    %1391 = vmatprep.subr.bf16.mxu0 0
    %1392 = vmatpush1.bf16.msra.mxu0 0
    %1393 = vmatprep.subr.bf16.mxu0 0
    %1394 = vmatpush1.bf16.msra.mxu0 0
    %1395 = vmatprep.subr.bf16.mxu0 0
    %1396 = vmatpush1.bf16.msra.mxu0 0
    %1397 = vmatprep.subr.bf16.mxu0 0
    %1398 = vmatpush1.bf16.msra.mxu0 0
    %1399 = vmatprep.subr.bf16.mxu0 0
    %1400 = vmatpush1.bf16.msra.mxu0 0
    %1401 = vmatprep.subr.bf16.mxu0 0
    %1402 = vmatpush1.bf16.msra.mxu0 0
    %1403 = vmatprep.subr.bf16.mxu0 0
    %1404 = vmatpush1.bf16.msra.mxu0 0
    %1405 = vmatprep.subr.bf16.mxu0 0
    %1406 = vmatpush1.bf16.msra.mxu0 0
    %1407 = vmatprep.subr.bf16.mxu0 0
    %1408 = vmatpush1.bf16.msra.mxu0 0
    %1409 = vmatprep.subr.bf16.mxu0 0
    %1410 = vmatpush1.bf16.msra.mxu0 0
    %1411 = vmatprep.subr.bf16.mxu0 0
    %1412 = vmatpush1.bf16.msra.mxu0 0
    %1413 = vmatprep.subr.bf16.mxu0 0
    %1414 = vmatpush1.bf16.msra.mxu0 0
    %1415 = vmatprep.mubr.bf16.mxu0 0
    %1416 = vmatmul.mubr.bf16.gmra.mrb[0].mxu0 %v1381
    %v1417 = vpop.f32.mrb[0].mxu0
    %v1418 = vadd.f32 %v1367, %v1417
    %v1419 = vpop.f32.mrb[0].mxu0
    %v1420 = vpop.f32.mrb[0].mxu0
    %v1421 = vpop.f32.mrb[0].mxu0
    %1422 = vdwg.mxu0
    %v1423 = vmax.f32 %v1418, 0.0
    %v1424 = vpack.c.bf16 %v1423, %v1423
    %v1425 = vlaneseq
    %v1426 = vshrl.u32 %v1425, 7
    %v1427 = vsub.s32 1, %v1426
    %v1428 = vrot.slane %v70, %v1427
    %v1429 = vunpack.c.h.b16 %v59
    %v1430 = vunpack.c.h.b16 %v62
    %v1431 = vunpack.c.h.b16 %v65
    %v1432 = vunpack.c.h.b16 %v68
    %v1433 = vpack.c.b16 %v1430, %v1429
    %v1434 = vpack.c.b16 %v1432, %v1431
    %v1438 = vsel %vm94, %v1424, 0
    %1440 = vmatprep.subr.bf16.mxu0 0
    %1441 = vmatpush1.bf16.msra.mxu0 %v1433
    %1442 = vmatprep.subr.bf16.mxu0 0
    %1443 = vmatpush1.bf16.msra.mxu0 %v1434
    %1444 = vmatprep.subr.bf16.mxu0 0
    %1445 = vmatpush1.bf16.msra.mxu0 0
    %1446 = vmatprep.subr.bf16.mxu0 0
    %1447 = vmatpush1.bf16.msra.mxu0 0
    %1448 = vmatprep.subr.bf16.mxu0 0
    %1449 = vmatpush1.bf16.msra.mxu0 0
    %1450 = vmatprep.subr.bf16.mxu0 0
    %1451 = vmatpush1.bf16.msra.mxu0 0
    %1452 = vmatprep.subr.bf16.mxu0 0
    %1453 = vmatpush1.bf16.msra.mxu0 0
    %1454 = vmatprep.subr.bf16.mxu0 0
    %1455 = vmatpush1.bf16.msra.mxu0 0
    %1456 = vmatprep.subr.bf16.mxu0 0
    %1457 = vmatpush1.bf16.msra.mxu0 0
    %1458 = vmatprep.subr.bf16.mxu0 0
    %1459 = vmatpush1.bf16.msra.mxu0 0
    %1460 = vmatprep.subr.bf16.mxu0 0
    %1461 = vmatpush1.bf16.msra.mxu0 0
    %1462 = vmatprep.subr.bf16.mxu0 0
    %1463 = vmatpush1.bf16.msra.mxu0 0
    %1464 = vmatprep.subr.bf16.mxu0 0
    %1465 = vmatpush1.bf16.msra.mxu0 0
    %1466 = vmatprep.subr.bf16.mxu0 0
    %1467 = vmatpush1.bf16.msra.mxu0 0
    %1468 = vmatprep.subr.bf16.mxu0 0
    %1469 = vmatpush1.bf16.msra.mxu0 0
    %1470 = vmatprep.subr.bf16.mxu0 0
    %1471 = vmatpush1.bf16.msra.mxu0 0
    %1472 = vmatprep.mubr.bf16.mxu0 0
    %1473 = vmatmul.mubr.bf16.gmra.mrb[0].mxu0 %v1438
    %v1474 = vpop.f32.mrb[0].mxu0
    %v1475 = vadd.f32 %v1428, %v1474
    %v1476 = vpop.f32.mrb[0].mxu0
    %v1477 = vpop.f32.mrb[0].mxu0
    %v1478 = vpop.f32.mrb[0].mxu0
    %1479 = vdwg.mxu0
    %1480 = vst [vmem:[#allocation8] sm:$0x3] %v1475
    // Predicated region
    $region26: #{neurallog_forward.1} parent=1 // pred_check
      _
    $region27: #{neurallog_forward.1} parent=1 // pred_check_branch
      %1482 = sbr.rel (0) target = $region29
    $region28: #{neurallog_forward.1} parent=1 // pred_region
      %s1484 = ssub.s32 32, 32
      %1485 = vsyncadd [#allocation4], %s1484
      %s1487 = sshll.u32 [#allocation8], 4
      %s1488 = int_to_ptr.vmem [resolvable:$true] %s1487
      %1490 = dma.vmem_to_hbm [thread:$0]  %s1488, 32, %s3, [#allocation4]
    $region29: #{neurallog_forward.1} parent=1 // pred_fallthru
      _
    // Predicated region
    $region30: #{neurallog_forward.1} parent=1 // pred_check
      _
    $region31: #{neurallog_forward.1} parent=1 // pred_check_branch
      %1492 = sbr.rel (0) target = $region33
    $region32: #{neurallog_forward.1} parent=1 // pred_region
      %1493 = dma.done [#allocation4], 32
    $region33: #{neurallog_forward.1} parent=1 // pred_fallthru
      _
    %1494 = vsyncpa [#allocation3], 1
    %1495 = vsyncpa [#allocation6], 1
    %1496 = vsyncpa [#allocation4], 1

</llo_original>
